<compile_context>
chip_gen: v6e
topology: v6e:2x2x1
jax: 0.10.0
libtpu: 0.0.40
codegen_flags: <defaults>
</compile_context>

<pallas_src>
import numpy as np

import jax
import jax.numpy as jnp
from jax.experimental import pallas as pl
from jax.experimental.pallas import tpu as pltpu

MAX_NB = 30            # same semantic limit as the PyTorch module
NB_PAD = 32            # MAX_NB padded to a sublane multiple
LANE = 128             # pad feature dims (hidden / latent / vocab) to this
SUBLANE = 8            # pad row counts to this
NEG_INF = -1e9

# Set to jnp.bfloat16 on v6e/v7x for full-rate MXU (f32 accumulation kept via
# preferred_element_type); jnp.float32 keeps exact parity with the PyTorch
# reference module.
MM_DTYPE = jnp.float32


def _mm(a, b):
    return jnp.dot(a.astype(MM_DTYPE), b.astype(MM_DTYPE),
                   preferred_element_type=jnp.float32)


def _ceil_to(x, m):
    return ((x + m - 1) // m) * m


def _pad2(a, rows, cols, fill=0.0):
    r, c = a.shape
    return jnp.pad(a, ((0, rows - r), (0, cols - c)), constant_values=fill)


# ----------------------------------------------------------------------------
# Pallas kernels
# ----------------------------------------------------------------------------
def _tree_gru_kernel(x_ref, nei_ref, oidx_ref,
                     wz_ref, bz_ref, wr_ref, br_ref, ur_ref, wh_ref, bh_ref,
                     hmsg_ref):
    """One DFS timestep of the tree GRU (nnutils.GRU).

    Grid axis = timestep.  `hmsg_ref` (edge id -> message) is a VMEM-resident
    accumulator across all steps; weights have constant index_maps so they are
    DMA'd once.  Gather/scatter of messages are one-hot matmuls on the MXU.
    """
    t = pl.program_id(0)

    @pl.when(t == 0)
    def _init():
        hmsg_ref[...] = jnp.zeros_like(hmsg_ref)

    x = x_ref[0]                        # (R, H)   embedded node_x words
    nei = nei_ref[0]                    # (R, NB)  incoming-message edge ids (0 = zero pad)
    out_row = oidx_ref[0]               # (1, R)   edge id written by each row
    hmsg = hmsg_ref[...]                # (E, H)   message table (pre-step state)

    r_rows, nb = nei.shape
    e_rows, h_dim = hmsg.shape

    # ---- gather neighbour messages:  one-hot(nei) @ hmsg  (single MXU pass) --
    sel = (jax.lax.broadcasted_iota(jnp.int32, (r_rows, nb, e_rows), 2)
           == nei[:, :, None]).astype(jnp.float32)
    sel2 = sel.reshape(r_rows * nb, e_rows)                                  # (R*NB, E)
    h_nei_flat = jnp.dot(sel2, hmsg, preferred_element_type=jnp.float32)     # (R*NB, H)
    h_nei = h_nei_flat.reshape(r_rows, nb, h_dim)

    sum_h = jnp.sum(h_nei, axis=1)                                           # (R, H)

    # ---- GRU, concat folded into single K=2H matmuls -------------------------
    xz = jnp.concatenate([x, sum_h], axis=-1)                                # (R, 2H)
    z = jax.nn.sigmoid(_mm(xz, wz_ref[...]) + bz_ref[...])

    r1 = _mm(x, wr_ref[...]) + br_ref[...]                                   # (R, H)
    r2 = _mm(h_nei_flat, ur_ref[...]).reshape(r_rows, nb, h_dim)             # ONE matmul
    r_gate = jax.nn.sigmoid(r1[:, None, :] + r2)
    sum_gated = jnp.sum(r_gate * h_nei, axis=1)                              # (R, H)

    xh = jnp.concatenate([x, sum_gated], axis=-1)
    pre_h = jnp.tanh(_mm(xh, wh_ref[...]) + bh_ref[...])
    new_h = (1.0 - z) * sum_h + z * pre_h                                    # (R, H)

    # ---- scatter-add new messages (each real edge written exactly once) ------
    osel_t = (jax.lax.broadcasted_iota(jnp.int32, (e_rows, r_rows), 0)
              == out_row).astype(jnp.float32)                                # (E, R)
    upd = jnp.dot(osel_t, new_h, preferred_element_type=jnp.float32)         # (E, H)
    hmsg_ref[...] = hmsg + upd


def _word_kernel(hid_ref, ctx_ref, tgt_ref, msk_ref,
                 w_ref, wb_ref, wo_ref, wob_ref,
                 loss_ref, acc_ref):
    """aggregate(..., 'word') + in-kernel sum-reduced CE loss + argmax accuracy."""
    inp = jnp.concatenate([hid_ref[...], ctx_ref[...]], axis=-1)             # (P, H+L)
    z = jnp.maximum(_mm(inp, w_ref[...]) + wb_ref[...], 0.0)                 # (P, H)
    logits = _mm(z, wo_ref[...]) + wob_ref[...]                              # (P, Vp)

    tgt = tgt_ref[...]                                                       # (P, 1) i32
    msk = msk_ref[...]                                                       # (P, 1) f32
    p_rows, vp = logits.shape
    col = jax.lax.broadcasted_iota(jnp.int32, (p_rows, vp), 1)
    onehot = (col == tgt)

    mx = jnp.max(logits, axis=1, keepdims=True)
    lse = jnp.log(jnp.sum(jnp.exp(logits - mx), axis=1, keepdims=True)) + mx
    tgt_logit = jnp.sum(jnp.where(onehot, logits, 0.0), axis=1, keepdims=True)
    loss_rows = (lse - tgt_logit) * msk

    # torch.max picks the first maximal index
    first_arg = jnp.min(jnp.where(logits == mx, col, vp), axis=1, keepdims=True)
    acc_rows = (first_arg == tgt).astype(jnp.float32) * msk

    loss_ref[...] = jnp.sum(loss_rows, axis=0, keepdims=True)                # (1, 1)
    acc_ref[...] = jnp.sum(acc_rows, axis=0, keepdims=True)                  # (1, 1)


def _stop_kernel(x_ref, onei_ref, hmsg_ref, ctx_ref, tgt_ref, msk_ref,
                 ui_ref, uib_ref, u_ref, ub_ref, uo_ref, uob_ref,
                 loss_ref, acc_ref):
    """Neighbour-sum + relu(U_i([x, o])) + aggregate(..., 'stop') with the
    final H->1 matvec fused as a VPU multiply + lane reduce, plus in-kernel
    sum-reduced BCE-with-logits loss and accuracy."""
    x = x_ref[...]                                                           # (S, H)
    onei = onei_ref[...]                                                     # (S, NB)
    hmsg = hmsg_ref[...]                                                     # (E, H)
    s_rows, nb = onei.shape
    e_rows = hmsg.shape[0]

    # counts[s, e] = #neighbour slots of row s pointing at edge e.
    # cur_o = counts @ hmsg  (edge 0 is the all-zero pad message, so repeats of
    # it contribute nothing).
    cnt = jnp.sum((jax.lax.broadcasted_iota(jnp.int32, (s_rows, nb, e_rows), 2)
                   == onei[:, :, None]).astype(jnp.float32), axis=1)         # (S, E)
    cur_o = jnp.dot(cnt, hmsg, preferred_element_type=jnp.float32)           # (S, H)

    sh = jnp.maximum(_mm(jnp.concatenate([x, cur_o], axis=-1), ui_ref[...])
                     + uib_ref[...], 0.0)                                    # relu(U_i)
    zz = jnp.maximum(_mm(jnp.concatenate([sh, ctx_ref[...]], axis=-1), u_ref[...])
                     + ub_ref[...], 0.0)                                     # relu(U)
    score = jnp.sum(zz * uo_ref[...], axis=1, keepdims=True) + uob_ref[...]  # U_o -> (S,1)

    tgt = tgt_ref[...]                                                       # (S, 1) f32
    msk = msk_ref[...]                                                       # (S, 1) f32
    loss_rows = (jnp.maximum(score, 0.0) - score * tgt
                 + jnp.log1p(jnp.exp(-jnp.abs(score)))) * msk
    acc_rows = ((score >= 0.0).astype(jnp.float32) == tgt).astype(jnp.float32) * msk

    loss_ref[...] = jnp.sum(loss_rows, axis=0, keepdims=True)                # (1, 1)
    acc_ref[...] = jnp.sum(acc_rows, axis=0, keepdims=True)                  # (1, 1)


# ----------------------------------------------------------------------------
# Kernel wrappers
# ----------------------------------------------------------------------------
def _vmem_call(kernel, out_shapes, *args):
    out_shapes = tuple(out_shapes)
    return pl.pallas_call(
        kernel,
        out_shape=out_shapes,
        in_specs=[pl.BlockSpec(memory_space=pltpu.MemorySpace.VMEM)] * len(args),
        out_specs=tuple(pl.BlockSpec(memory_space=pltpu.MemorySpace.VMEM)
                        for _ in out_shapes),
    )(*args)


def _run_tree_gru(pd, x_emb_steps, nei_steps, out_steps, e_pad):
    t_steps, r_pad, h_pad = x_emb_steps.shape
    nb = nei_steps.shape[2]
    const2 = lambda t: (0, 0)
    return pl.pallas_call(
        _tree_gru_kernel,
        out_shape=jax.ShapeDtypeStruct((e_pad, h_pad), jnp.float32),
        grid=(t_steps,),
        in_specs=[
            pl.BlockSpec((1, r_pad, h_pad), lambda t: (t, 0, 0)),  # x embeddings
            pl.BlockSpec((1, r_pad, nb), lambda t: (t, 0, 0)),     # neighbour edge ids
            pl.BlockSpec((1, 1, r_pad), lambda t: (t, 0, 0)),      # output edge ids
            pl.BlockSpec((2 * h_pad, h_pad), const2),              # W_z (pre-concat)
            pl.BlockSpec((1, h_pad), const2),                      # b_z
            pl.BlockSpec((h_pad, h_pad), const2),                  # W_r
            pl.BlockSpec((1, h_pad), const2),                      # b_r
            pl.BlockSpec((h_pad, h_pad), const2),                  # U_r
            pl.BlockSpec((2 * h_pad, h_pad), const2),              # W_h (pre-concat)
            pl.BlockSpec((1, h_pad), const2),                      # b_h
        ],
        out_specs=pl.BlockSpec((e_pad, h_pad), const2),            # resident message table
        compiler_params=pltpu.CompilerParams(
            dimension_semantics=("arbitrary",)),
    )(x_emb_steps, nei_steps, out_steps,
      pd['wz_full'], pd['bz'], pd['wr'], pd['br'], pd['ur'],
      pd['wh_full'], pd['bh'])


# ----------------------------------------------------------------------------
# Host-side tree structures / DFS (RDKit-free stand-in; same fields used by
# the original forward(): .idx, .wid, .neighbors)
# ----------------------------------------------------------------------------
class MolTreeNode:
    def __init__(self, idx, wid):
        self.idx = idx
        self.wid = wid
        self.neighbors = []


class MolTree:
    def __init__(self, nodes):
        self.nodes = nodes


def dfs(stack, x, fa_idx):
    for y in x.neighbors:
        if y.idx == fa_idx:
            continue
        stack.append((x, y, 1))
        dfs(stack, y, x.idx)
        stack.append((y, x, 0))


# ----------------------------------------------------------------------------
# Parameters (deterministic synthetic init; shapes from JTNNDecoder.__init__,
# nn.Linear weights stored pre-transposed as [in_features, out_features])
# ----------------------------------------------------------------------------
def init_params(key, vocab_size, hidden_size, latent_size):
    shapes = {
        'embedding': (vocab_size, hidden_size),
        # GRU: W_z (2H->H), W_r (H->H), U_r (H->H, no bias), W_h (2H->H)
        'wz_x': (hidden_size, hidden_size), 'wz_h': (hidden_size, hidden_size),
        'bz': (1, hidden_size),
        'wr': (hidden_size, hidden_size), 'br': (1, hidden_size),
        'ur': (hidden_size, hidden_size),
        'wh_x': (hidden_size, hidden_size), 'wh_h': (hidden_size, hidden_size),
        'bh': (1, hidden_size),
        # word aggregate: W (H+L -> H), W_o (H -> vocab)
        'w_h': (hidden_size, hidden_size), 'w_c': (latent_size, hidden_size),
        'w_b': (1, hidden_size),
        'wo': (hidden_size, vocab_size), 'wo_b': (1, vocab_size),
        # stop aggregate: U (H+L -> H), U_o (H -> 1)
        'u_h': (hidden_size, hidden_size), 'u_c': (latent_size, hidden_size),
        'u_b': (1, hidden_size),
        'uo': (hidden_size, 1), 'uo_b': (1, 1),
        # U_i (2H -> H)
        'ui_x': (hidden_size, hidden_size), 'ui_o': (hidden_size, hidden_size),
        'ui_b': (1, hidden_size),
    }
    keys = jax.random.split(key, len(shapes))
    params = {}
    for (name, shape), k in zip(shapes.items(), keys):
        params[name] = (0.1 * jax.random.normal(k, shape)).astype(jnp.float32)
    return params


def prepare_params(p):
    """Pad feature dims to lane multiples and pre-concatenate the concat-split
    linears once (host side), producing the layout the kernels consume."""
    h = p['wz_x'].shape[0]
    l = p['w_c'].shape[0]
    v = p['wo'].shape[1]
    hp = _ceil_to(h, LANE)
    lp = _ceil_to(l, LANE)
    vp = _ceil_to(v, LANE)

    pw = _pad2
    pd = {
        'h': h, 'l': l, 'v': v, 'hp': hp, 'lp': lp, 'vp': vp,
        'embedding': pw(p['embedding'], p['embedding'].shape[0], hp),
        'wz_full': jnp.concatenate([pw(p['wz_x'], hp, hp), pw(p['wz_h'], hp, hp)], axis=0),
        'bz': pw(p['bz'], 1, hp),
        'wr': pw(p['wr'], hp, hp), 'br': pw(p['br'], 1, hp),
        'ur': pw(p['ur'], hp, hp),
        'wh_full': jnp.concatenate([pw(p['wh_x'], hp, hp), pw(p['wh_h'], hp, hp)], axis=0),
        'bh': pw(p['bh'], 1, hp),
        'ui_full': jnp.concatenate([pw(p['ui_x'], hp, hp), pw(p['ui_o'], hp, hp)], axis=0),
        'ui_b': pw(p['ui_b'], 1, hp),
        'w_full': jnp.concatenate([pw(p['w_h'], hp, hp), pw(p['w_c'], lp, hp)], axis=0),
        'w_b': pw(p['w_b'], 1, hp),
        'wo': pw(p['wo'], hp, vp),
        # padded vocab columns get a huge negative bias: they never win softmax/argmax
        'wo_b': jnp.pad(p['wo_b'], ((0, 0), (0, vp - v)), constant_values=NEG_INF),
        'u_full': jnp.concatenate([pw(p['u_h'], hp, hp), pw(p['u_c'], lp, hp)], axis=0),
        'u_b': pw(p['u_b'], 1, hp),
        'uo_row': pw(p['uo'].T, 1, hp),    # (1, H_pad) for the fused VPU dot
        'uo_b': p['uo_b'],                 # (1, 1)
    }
    return pd


# ----------------------------------------------------------------------------
# JTNNDecoder.forward
# ----------------------------------------------------------------------------
def jtnn_decoder_forward(p, mol_batch, x_tree_vecs):
    pd = prepare_params(p)
    hp, lp = pd['hp'], pd['lp']
    batch_size = len(mol_batch)

    # -------- host-side DFS / index bookkeeping (same glue as PyTorch) --------
    traces = []
    for mol_tree in mol_batch:
        s = []
        dfs(s, mol_tree.nodes[0], -1)
        traces.append(s)
        for node in mol_tree.nodes:
            node.neighbors = []

    max_iter = max((len(tr) for tr in traces), default=0)
    r_pad = _ceil_to(max(batch_size, 1), SUBLANE)
    total_msgs = sum(len(tr) for tr in traces)
    e_pad = _ceil_to(total_msgs + 2, LANE)     # edge 0 = zero pad, last = dummy sink
    dummy_eid = e_pad - 1

    x_wid_steps = np.zeros((max(max_iter, 1), r_pad), np.int32)
    nei_steps = np.zeros((max(max_iter, 1), r_pad, NB_PAD), np.int32)
    out_steps = np.full((max(max_iter, 1), 1, r_pad), dummy_eid, np.int32)

    stop_wid, stop_onei, stop_ctx, stop_tgt = [], [], [], []
    pred_eid, pred_ctx, pred_tgt = [], [], []

    # torch: pred list starts with a zeros block, one row per tree root
    for i, mol_tree in enumerate(mol_batch):
        pred_eid.append(0)                     # edge 0 is the all-zero message
        pred_ctx.append(i)
        pred_tgt.append(mol_tree.nodes[0].wid)

    edge_id = {}
    next_eid = 1
    for t in range(max_iter):
        rows = []
        for i, plist in enumerate(traces):
            if t < len(plist):
                rows.append((i, plist[t]))

        # gather lists use the PRE-step message / neighbour state
        staged = []
        for slot, (i, (node_x, node_y, direction)) in enumerate(rows):
            h_ids = [edge_id[(z.idx, node_x.idx)] for z in node_x.neighbors
                     if z.idx != node_y.idx]
            o_ids = [edge_id[(z.idx, node_x.idx)] for z in node_x.neighbors]
            assert len(o_ids) <= MAX_NB, "node with more than MAX_NB neighbors"
            staged.append((slot, i, node_x, node_y, direction, h_ids, o_ids))

        # commit this step: assign edge ids, fill device tables, update tree state
        for slot, i, node_x, node_y, direction, h_ids, o_ids in staged:
            eid = next_eid
            next_eid += 1
            edge_id[(node_x.idx, node_y.idx)] = eid

            x_wid_steps[t, slot] = node_x.wid
            if h_ids:
                nei_steps[t, slot, :len(h_ids)] = h_ids
            out_steps[t, 0, slot] = eid

            stop_wid.append(node_x.wid)
            stop_onei.append(o_ids)
            stop_ctx.append(i)
            stop_tgt.append(float(direction))

            if direction == 1:
                pred_eid.append(eid)
                pred_ctx.append(i)
                pred_tgt.append(node_y.wid)

            node_y.neighbors.append(node_x)

    # final stop prediction at the root of every tree
    for i, mol_tree in enumerate(mol_batch):
        node_x = mol_tree.nodes[0]
        o_ids = [edge_id[(z.idx, node_x.idx)] for z in node_x.neighbors]
        assert len(o_ids) <= MAX_NB, "node with more than MAX_NB neighbors"
        stop_wid.append(node_x.wid)
        stop_onei.append(o_ids)
        stop_ctx.append(i)
        stop_tgt.append(0.0)

    # -------- one gridded kernel over all DFS timesteps ------------------------
    if max_iter > 0:
        x_emb_steps = jnp.take(pd['embedding'],
                               jnp.asarray(x_wid_steps.reshape(-1)),
                               axis=0).reshape(max_iter, r_pad, hp)
        h_msg = _run_tree_gru(pd, x_emb_steps,
                              jnp.asarray(nei_steps[:max_iter]),
                              jnp.asarray(out_steps[:max_iter]), e_pad)
    else:
        h_msg = jnp.zeros((e_pad, hp), jnp.float32)

    xtv = _pad2(x_tree_vecs.astype(jnp.float32), batch_size, lp)

    # -------- word (label) prediction: fused aggregate + CE --------------------
    n_pred = len(pred_tgt)
    p_pad = _ceil_to(n_pred, SUBLANE)
    pred_eid_a = np.zeros((p_pad,), np.int32); pred_eid_a[:n_pred] = pred_eid
    pred_ctx_a = np.zeros((p_pad,), np.int32); pred_ctx_a[:n_pred] = pred_ctx
    pred_tgt_a = np.zeros((p_pad, 1), np.int32); pred_tgt_a[:n_pred, 0] = pred_tgt
    pred_msk_a = np.zeros((p_pad, 1), np.float32); pred_msk_a[:n_pred, 0] = 1.0

    pred_hiddens = jnp.take(h_msg, jnp.asarray(pred_eid_a), axis=0)     # (Pp, Hp)
    pred_ctx_vec = jnp.take(xtv, jnp.asarray(pred_ctx_a), axis=0)       # (Pp, Lp)
    word_loss_sum, word_corr_sum = _vmem_call(
        _word_kernel,
        (jax.ShapeDtypeStruct((1, 1), jnp.float32),
         jax.ShapeDtypeStruct((1, 1), jnp.float32)),
        pred_hiddens, pred_ctx_vec,
        jnp.asarray(pred_tgt_a), jnp.asarray(pred_msk_a),
        pd['w_full'], pd['w_b'], pd['wo'], pd['wo_b'])
    pred_loss = word_loss_sum[0, 0] / batch_size
    pred_acc = word_corr_sum[0, 0] / n_pred

    # -------- stop (topological) prediction: fused nbr-sum + U_i + U + U_o + BCE
    n_stop = len(stop_tgt)
    s_pad = _ceil_to(n_stop, SUBLANE)
    stop_wid_a = np.zeros((s_pad,), np.int32); stop_wid_a[:n_stop] = stop_wid
    stop_onei_a = np.zeros((s_pad, NB_PAD), np.int32)
    for s, ids in enumerate(stop_onei):
        if ids:
            stop_onei_a[s, :len(ids)] = ids
    stop_ctx_a = np.zeros((s_pad,), np.int32); stop_ctx_a[:n_stop] = stop_ctx
    stop_tgt_a = np.zeros((s_pad, 1), np.float32); stop_tgt_a[:n_stop, 0] = stop_tgt
    stop_msk_a = np.zeros((s_pad, 1), np.float32); stop_msk_a[:n_stop, 0] = 1.0

    stop_x_emb = jnp.take(pd['embedding'], jnp.asarray(stop_wid_a), axis=0)   # (Sp, Hp)
    stop_ctx_vec = jnp.take(xtv, jnp.asarray(stop_ctx_a), axis=0)             # (Sp, Lp)
    stop_loss_sum, stop_corr_sum = _vmem_call(
        _stop_kernel,
        (jax.ShapeDtypeStruct((1, 1), jnp.float32),
         jax.ShapeDtypeStruct((1, 1), jnp.float32)),
        stop_x_emb, jnp.asarray(stop_onei_a), h_msg, stop_ctx_vec,
        jnp.asarray(stop_tgt_a), jnp.asarray(stop_msk_a),
        pd['ui_full'], pd['ui_b'], pd['u_full'], pd['u_b'],
        pd['uo_row'], pd['uo_b'])
    stop_loss = stop_loss_sum[0, 0] / batch_size
    stop_acc = stop_corr_sum[0, 0] / n_stop

    # TODO(synk): decode() (greedy generation with have_slots/can_assemble RDKit
    # chemistry checks) has no clean Pallas equivalent and is not implemented.
    return pred_loss, stop_loss, pred_acc, stop_acc


# ----------------------------------------------------------------------------
if __name__ == "__main__":
    key = jax.random.PRNGKey(0)
    hidden_size, latent_size, vocab_size = 32, 24, 16
    params = init_params(key, vocab_size, hidden_size, latent_size)

    def build_tree(idx_offset, wids, edges):
        nodes = [MolTreeNode(idx_offset + i, w) for i, w in enumerate(wids)]
        for a, b in edges:
            nodes[a].neighbors.append(nodes[b])
            nodes[b].neighbors.append(nodes[a])
        return MolTree(nodes)

    # batch of 2 small junction trees (node idx unique across the batch)
    tree0 = build_tree(0, [3, 7, 1, 12], [(0, 1), (1, 2), (1, 3)])
    tree1 = build_tree(4, [5, 9, 2], [(0, 1), (0, 2)])
    mol_batch = [tree0, tree1]

    kx = jax.random.split(key, 3)[2]
    x_tree_vecs = (0.5 * jax.random.normal(
        kx, (len(mol_batch), latent_size))).astype(jnp.float32)

    pred_loss, stop_loss, pred_acc, stop_acc = jtnn_decoder_forward(
        params, mol_batch, x_tree_vecs)
    jax.block_until_ready((pred_loss, stop_loss, pred_acc, stop_acc))

    vals = np.array([float(pred_loss), float(stop_loss),
                     float(pred_acc), float(stop_acc)])
    assert np.all(np.isfinite(vals)), "non-finite outputs"
    print("KERNEL_OK")
</pallas_src>

<mosaic_0001>
module attributes {stable_mosaic.version = 11 : i64} {
  func.func @_tree_gru_kernel(%arg0: i32, %arg1: memref<1x8x128xf32, #tpu.memory_space<vmem>>, %arg2: memref<1x8x32xi32, #tpu.memory_space<vmem>>, %arg3: memref<1x1x8xi32, #tpu.memory_space<vmem>>, %arg4: memref<256x128xf32, #tpu.memory_space<vmem>>, %arg5: memref<1x128xf32, #tpu.memory_space<vmem>>, %arg6: memref<128x128xf32, #tpu.memory_space<vmem>>, %arg7: memref<1x128xf32, #tpu.memory_space<vmem>>, %arg8: memref<128x128xf32, #tpu.memory_space<vmem>>, %arg9: memref<256x128xf32, #tpu.memory_space<vmem>>, %arg10: memref<1x128xf32, #tpu.memory_space<vmem>>, %arg11: memref<128x128xf32, #tpu.memory_space<vmem>>) attributes {dimension_semantics = [#tpu.dimension_semantics<arbitrary>], iteration_bounds = array<i64: 6>, scalar_prefetch = 0 : i64, scratch_operands = 0 : i64, tpu.core_type = #tpu.core_type<tc>, window_params = [{transform_indices = @transform_0, window_bounds = array<i64: 1, 8, 128>}, {transform_indices = @transform_1, window_bounds = array<i64: 1, 8, 32>}, {transform_indices = @transform_2, window_bounds = array<i64: 1, 1, 8>}, {pipeline_mode = #tpu.pipeline_mode<synchronous>, transform_indices = @transform_3, window_bounds = array<i64: 256, 128>}, {pipeline_mode = #tpu.pipeline_mode<synchronous>, transform_indices = @transform_4, window_bounds = array<i64: 1, 128>}, {pipeline_mode = #tpu.pipeline_mode<synchronous>, transform_indices = @transform_5, window_bounds = array<i64: 128, 128>}, {pipeline_mode = #tpu.pipeline_mode<synchronous>, transform_indices = @transform_6, window_bounds = array<i64: 1, 128>}, {pipeline_mode = #tpu.pipeline_mode<synchronous>, transform_indices = @transform_7, window_bounds = array<i64: 128, 128>}, {pipeline_mode = #tpu.pipeline_mode<synchronous>, transform_indices = @transform_8, window_bounds = array<i64: 256, 128>}, {pipeline_mode = #tpu.pipeline_mode<synchronous>, transform_indices = @transform_9, window_bounds = array<i64: 1, 128>}, {pipeline_mode = #tpu.pipeline_mode<synchronous>, transform_indices = @transform_10, window_bounds = array<i64: 128, 128>}]} {
    %c0_i32 = arith.constant 0 : i32
    %0 = arith.cmpi eq, %arg0, %c0_i32 : i32
    %1 = arith.extui %0 : i1 to i32
    %c0_i32_0 = arith.constant 0 : i32
    %2 = arith.cmpi ne, %1, %c0_i32_0 : i32
    scf.if %2 {
      %cst_37 = arith.constant 0.000000e+00 : f32
      %69 = vector.broadcast %cst_37 : f32 to vector<128x128xf32>
      %c0_38 = arith.constant 0 : index
      %c0_39 = arith.constant 0 : index
      %70 = vector.load %arg11[%c0_38, %c0_39] : memref<128x128xf32, #tpu.memory_space<vmem>>, vector<128x128xf32>
      tpu.vector_store %arg11[%c0_38, %c0_39], %69 {strides = array<i32>} : memref<128x128xf32, #tpu.memory_space<vmem>>, vector<128x128xf32>,
    } else {
    }
    %c0 = arith.constant 0 : index
    %c0_1 = arith.constant 0 : index
    %c0_2 = arith.constant 0 : index
    %3 = vector.load %arg1[%c0, %c0_1, %c0_2] : memref<1x8x128xf32, #tpu.memory_space<vmem>>, vector<1x8x128xf32>
    %4 = vector.shape_cast %3 : vector<1x8x128xf32> to vector<8x128xf32>
    %c0_3 = arith.constant 0 : index
    %c0_4 = arith.constant 0 : index
    %c0_5 = arith.constant 0 : index
    %5 = vector.load %arg2[%c0_3, %c0_4, %c0_5] : memref<1x8x32xi32, #tpu.memory_space<vmem>>, vector<1x8x32xi32>
    %6 = vector.shape_cast %5 : vector<1x8x32xi32> to vector<8x32xi32>
    %c0_6 = arith.constant 0 : index
    %c0_7 = arith.constant 0 : index
    %c0_8 = arith.constant 0 : index
    %7 = vector.load %arg3[%c0_6, %c0_7, %c0_8] : memref<1x1x8xi32, #tpu.memory_space<vmem>>, vector<1x1x8xi32>
    %8 = vector.shape_cast %7 : vector<1x1x8xi32> to vector<1x8xi32>
    %c0_9 = arith.constant 0 : index
    %c0_10 = arith.constant 0 : index
    %9 = vector.load %arg11[%c0_9, %c0_10] : memref<128x128xf32, #tpu.memory_space<vmem>>, vector<128x128xf32>
    %10 = tpu.iota {dimensions = array<i32: 2>} : vector<8x32x128xi32>
    %11 = vector.shape_cast %6 : vector<8x32xi32> to vector<8x32x1xi32>
    %12 = vector.broadcast %11 : vector<8x32x1xi32> to vector<8x32x128xi32>
    %13 = arith.cmpi eq, %10, %12 : vector<8x32x128xi32>
    %14 = arith.extui %13 : vector<8x32x128xi1> to vector<8x32x128xi32>
    %15 = arith.sitofp %14 : vector<8x32x128xi32> to vector<8x32x128xf32>
    %16 = vector.shape_cast %15 : vector<8x32x128xf32> to vector<256x128xf32>
    %cst = arith.constant dense<0.000000e+00> : vector<256x128xf32>
    %17 = tpu.matmul %16, %9, %cst {dimension_numbers = #tpu.dot_dimension_numbers<[1], [0], [0], [1], [0, 0, 1, 1], [], []>} : vector<256x128xf32>, vector<128x128xf32>, vector<256x128xf32> -> vector<256x128xf32>
    %18 = vector.shape_cast %17 : vector<256x128xf32> to vector<8x32x128xf32>
    %cst_11 = arith.constant dense<0.000000e+00> : vector<8x128xf32>
    %19 = vector.multi_reduction <add>, %18, %cst_11 [1] : vector<8x32x128xf32> to vector<8x128xf32>
    %20 = tpu.concatenate %4, %19 in 1 : vector<8x128xf32>, vector<8x128xf32> -> vector<8x256xf32>
    %c0_12 = arith.constant 0 : index
    %c0_13 = arith.constant 0 : index
    %21 = vector.load %arg4[%c0_12, %c0_13] : memref<256x128xf32, #tpu.memory_space<vmem>>, vector<256x128xf32>
    %cst_14 = arith.constant dense<0.000000e+00> : vector<8x128xf32>
    %22 = tpu.matmul %20, %21, %cst_14 {dimension_numbers = #tpu.dot_dimension_numbers<[1], [0], [0], [1], [0, 0, 1, 1], [], []>} : vector<8x256xf32>, vector<256x128xf32>, vector<8x128xf32> -> vector<8x128xf32>
    %c0_15 = arith.constant 0 : index
    %c0_16 = arith.constant 0 : index
    %23 = vector.load %arg5[%c0_15, %c0_16] : memref<1x128xf32, #tpu.memory_space<vmem>>, vector<1x128xf32>
    %24 = vector.broadcast %23 : vector<1x128xf32> to vector<8x128xf32>
    %25 = arith.addf %22, %24 : vector<8x128xf32>
    %26 = arith.negf %25 : vector<8x128xf32>
    %27 = math.exp %26 : vector<8x128xf32>
    %cst_17 = arith.constant 1.000000e+00 : f32
    %28 = vector.broadcast %cst_17 : f32 to vector<8x128xf32>
    %29 = arith.addf %28, %27 : vector<8x128xf32>
    %30 = arith.divf %28, %29 : vector<8x128xf32>
    %c0_18 = arith.constant 0 : index
    %c0_19 = arith.constant 0 : index
    %31 = vector.load %arg6[%c0_18, %c0_19] : memref<128x128xf32, #tpu.memory_space<vmem>>, vector<128x128xf32>
    %cst_20 = arith.constant dense<0.000000e+00> : vector<8x128xf32>
    %32 = tpu.matmul %4, %31, %cst_20 {dimension_numbers = #tpu.dot_dimension_numbers<[1], [0], [0], [1], [0, 0, 1, 1], [], []>} : vector<8x128xf32>, vector<128x128xf32>, vector<8x128xf32> -> vector<8x128xf32>
    %c0_21 = arith.constant 0 : index
    %c0_22 = arith.constant 0 : index
    %33 = vector.load %arg7[%c0_21, %c0_22] : memref<1x128xf32, #tpu.memory_space<vmem>>, vector<1x128xf32>
    %34 = vector.broadcast %33 : vector<1x128xf32> to vector<8x128xf32>
    %35 = arith.addf %32, %34 : vector<8x128xf32>
    %c0_23 = arith.constant 0 : index
    %c0_24 = arith.constant 0 : index
    %36 = vector.load %arg8[%c0_23, %c0_24] : memref<128x128xf32, #tpu.memory_space<vmem>>, vector<128x128xf32>
    %cst_25 = arith.constant dense<0.000000e+00> : vector<256x128xf32>
    %37 = tpu.matmul %17, %36, %cst_25 {dimension_numbers = #tpu.dot_dimension_numbers<[1], [0], [0], [1], [0, 0, 1, 1], [], []>} : vector<256x128xf32>, vector<128x128xf32>, vector<256x128xf32> -> vector<256x128xf32>
    %38 = vector.shape_cast %37 : vector<256x128xf32> to vector<8x32x128xf32>
    %39 = vector.shape_cast %35 : vector<8x128xf32> to vector<8x1x128xf32>
    %40 = vector.broadcast %39 : vector<8x1x128xf32> to vector<8x32x128xf32>
    %41 = arith.addf %40, %38 : vector<8x32x128xf32>
    %42 = arith.negf %41 : vector<8x32x128xf32>
    %43 = math.exp %42 : vector<8x32x128xf32>
    %cst_26 = arith.constant 1.000000e+00 : f32
    %44 = vector.broadcast %cst_26 : f32 to vector<8x32x128xf32>
    %45 = arith.addf %44, %43 : vector<8x32x128xf32>
    %46 = arith.divf %44, %45 : vector<8x32x128xf32>
    %47 = arith.mulf %46, %18 : vector<8x32x128xf32>
    %cst_27 = arith.constant dense<0.000000e+00> : vector<8x128xf32>
    %48 = vector.multi_reduction <add>, %47, %cst_27 [1] : vector<8x32x128xf32> to vector<8x128xf32>
    %49 = tpu.concatenate %4, %48 in 1 : vector<8x128xf32>, vector<8x128xf32> -> vector<8x256xf32>
    %c0_28 = arith.constant 0 : index
    %c0_29 = arith.constant 0 : index
    %50 = vector.load %arg9[%c0_28, %c0_29] : memref<256x128xf32, #tpu.memory_space<vmem>>, vector<256x128xf32>
    %cst_30 = arith.constant dense<0.000000e+00> : vector<8x128xf32>
    %51 = tpu.matmul %49, %50, %cst_30 {dimension_numbers = #tpu.dot_dimension_numbers<[1], [0], [0], [1], [0, 0, 1, 1], [], []>} : vector<8x256xf32>, vector<256x128xf32>, vector<8x128xf32> -> vector<8x128xf32>
    %c0_31 = arith.constant 0 : index
    %c0_32 = arith.constant 0 : index
    %52 = vector.load %arg10[%c0_31, %c0_32] : memref<1x128xf32, #tpu.memory_space<vmem>>, vector<1x128xf32>
    %53 = vector.broadcast %52 : vector<1x128xf32> to vector<8x128xf32>
    %54 = arith.addf %51, %53 : vector<8x128xf32>
    %55 = math.tanh %54 : vector<8x128xf32>
    %cst_33 = arith.constant 1.000000e+00 : f32
    %56 = vector.broadcast %cst_33 : f32 to vector<8x128xf32>
    %57 = arith.subf %56, %30 : vector<8x128xf32>
    %58 = arith.mulf %57, %19 : vector<8x128xf32>
    %59 = arith.mulf %30, %55 : vector<8x128xf32>
    %60 = arith.addf %58, %59 : vector<8x128xf32>
    %61 = tpu.iota {dimensions = array<i32: 0>} : vector<128x8xi32>
    %62 = vector.broadcast %8 : vector<1x8xi32> to vector<128x8xi32>
    %63 = arith.cmpi eq, %61, %62 : vector<128x8xi32>
    %64 = arith.extui %63 : vector<128x8xi1> to vector<128x8xi32>
    %65 = arith.sitofp %64 : vector<128x8xi32> to vector<128x8xf32>
    %cst_34 = arith.constant dense<0.000000e+00> : vector<128x128xf32>
    %66 = tpu.matmul %65, %60, %cst_34 {dimension_numbers = #tpu.dot_dimension_numbers<[1], [0], [0], [1], [0, 0, 1, 1], [], []>} : vector<128x8xf32>, vector<8x128xf32>, vector<128x128xf32> -> vector<128x128xf32>
    %67 = arith.addf %9, %66 : vector<128x128xf32>
    %c0_35 = arith.constant 0 : index
    %c0_36 = arith.constant 0 : index
    %68 = vector.load %arg11[%c0_35, %c0_36] : memref<128x128xf32, #tpu.memory_space<vmem>>, vector<128x128xf32>
    tpu.vector_store %arg11[%c0_35, %c0_36], %67 {strides = array<i32>} : memref<128x128xf32, #tpu.memory_space<vmem>>, vector<128x128xf32>,
    return
  }
  func.func @transform_0(%arg0: i32) -> (i32, i32, i32) {
    %c0_i32 = arith.constant 0 : i32
    %c0_i32_0 = arith.constant 0 : i32
    %c0_i32_1 = arith.constant 0 : i32
    return %arg0, %c0_i32, %c0_i32_0 : i32, i32, i32
  }
  func.func @transform_1(%arg0: i32) -> (i32, i32, i32) {
    %c0_i32 = arith.constant 0 : i32
    %c0_i32_0 = arith.constant 0 : i32
    %c0_i32_1 = arith.constant 0 : i32
    return %arg0, %c0_i32, %c0_i32_0 : i32, i32, i32
  }
  func.func @transform_2(%arg0: i32) -> (i32, i32, i32) {
    %c0_i32 = arith.constant 0 : i32
    %c0_i32_0 = arith.constant 0 : i32
    %c0_i32_1 = arith.constant 0 : i32
    return %arg0, %c0_i32, %c0_i32_0 : i32, i32, i32
  }
  func.func @transform_3(%arg0: i32) -> (i32, i32) {
    %c0_i32 = arith.constant 0 : i32
    %c0_i32_0 = arith.constant 0 : i32
    %c0_i32_1 = arith.constant 0 : i32
    return %c0_i32, %c0_i32_0 : i32, i32
  }
  func.func @transform_4(%arg0: i32) -> (i32, i32) {
    %c0_i32 = arith.constant 0 : i32
    %c0_i32_0 = arith.constant 0 : i32
    %c0_i32_1 = arith.constant 0 : i32
    return %c0_i32, %c0_i32_0 : i32, i32
  }
  func.func @transform_5(%arg0: i32) -> (i32, i32) {
    %c0_i32 = arith.constant 0 : i32
    %c0_i32_0 = arith.constant 0 : i32
    %c0_i32_1 = arith.constant 0 : i32
    return %c0_i32, %c0_i32_0 : i32, i32
  }
  func.func @transform_6(%arg0: i32) -> (i32, i32) {
    %c0_i32 = arith.constant 0 : i32
    %c0_i32_0 = arith.constant 0 : i32
    %c0_i32_1 = arith.constant 0 : i32
    return %c0_i32, %c0_i32_0 : i32, i32
  }
  func.func @transform_7(%arg0: i32) -> (i32, i32) {
    %c0_i32 = arith.constant 0 : i32
    %c0_i32_0 = arith.constant 0 : i32
    %c0_i32_1 = arith.constant 0 : i32
    return %c0_i32, %c0_i32_0 : i32, i32
  }
  func.func @transform_8(%arg0: i32) -> (i32, i32) {
    %c0_i32 = arith.constant 0 : i32
    %c0_i32_0 = arith.constant 0 : i32
    %c0_i32_1 = arith.constant 0 : i32
    return %c0_i32, %c0_i32_0 : i32, i32
  }
  func.func @transform_9(%arg0: i32) -> (i32, i32) {
    %c0_i32 = arith.constant 0 : i32
    %c0_i32_0 = arith.constant 0 : i32
    %c0_i32_1 = arith.constant 0 : i32
    return %c0_i32, %c0_i32_0 : i32, i32
  }
  func.func @transform_10(%arg0: i32) -> (i32, i32) {
    %c0_i32 = arith.constant 0 : i32
    %c0_i32_0 = arith.constant 0 : i32
    %c0_i32_1 = arith.constant 0 : i32
    return %c0_i32, %c0_i32_0 : i32, i32
  }
}

</mosaic_0001>

<llo_original>
// kernel: tpu_custom_call.1
$region0: #{tpu_custom_call.1}
  #allocation0 [shape = 'u32[]', space=smem, size = 0x4, offset = 0x4, fixed_abs, tag = 'smem constant byte address 0x4 - core index']
  #allocation1 [shape = 'u32[144,128]{1,0:T(1,128)}', space=vmem, size = 0x12000, scoped, tag = 'internal scratch']
  %s0 = inlined_call_operand.hbm [shape: f32[6,8,128], index: 0, kind: input, shape index: {}]
  %s1 = inlined_call_operand.hbm [shape: s32[6,8,32], index: 1, kind: input, shape index: {}]
  %s2 = inlined_call_operand.hbm [shape: s32[6,1,8], index: 2, kind: input, shape index: {}]
  %s3 = inlined_call_operand.hbm [shape: f32[256,128], index: 3, kind: input, shape index: {}]
  %s4 = inlined_call_operand.vmem [shape: f32[1,128], index: 4, kind: input, shape index: {}]
  %s5 = inlined_call_operand.hbm [shape: f32[128,128], index: 5, kind: input, shape index: {}]
  %s6 = inlined_call_operand.vmem [shape: f32[1,128], index: 6, kind: input, shape index: {}]
  %s7 = inlined_call_operand.hbm [shape: f32[128,128], index: 7, kind: input, shape index: {}]
  %s8 = inlined_call_operand.hbm [shape: f32[256,128], index: 8, kind: input, shape index: {}]
  %s9 = inlined_call_operand.vmem [shape: f32[1,128], index: 9, kind: input, shape index: {}]
  %s10 = inlined_call_operand.hbm [shape: f32[128,128], index: 10, kind: output, shape index: {}]
  %s11 = sld [smem:[#allocation0]]
  $region105: #{tpu_custom_call.1} parent=0
    _
  %s13 = ssub.s32 1, %s11
  %s14 = scalar_select 0, %s13, %s11
  $region1: #{tpu_custom_call.1} parent=0
    #allocation2 [shape = 'u8[8192]{0}', space=vmem, size = 0x2000, scoped, tag = 'input window, operand 0']
    #allocation3 [shape = 's32[2]{0}', space=sflag, size = 0x8, scoped, tag = 'scoped memory for tpu_custom_call.1']
    #allocation4 [shape = 's32[2]{0}', space=sflag, size = 0x8, scoped, tag = 'scoped memory for tpu_custom_call.1']
    #allocation5 [shape = 'u8[8192]{0}', space=vmem, size = 0x2000, scoped, tag = 'input window, operand 1']
    #allocation6 [shape = 's32[2]{0}', space=sflag, size = 0x8, scoped, tag = 'scoped memory for tpu_custom_call.1']
    #allocation7 [shape = 'u8[1024]{0}', space=vmem, size = 0x400, scoped, tag = 'input window, operand 2']
    #allocation8 [shape = 'u8[131072]{0}', space=vmem, size = 0x20000, scoped, tag = 'input window, operand 3, single buffered']
    #allocation9 [shape = 's32[1]{0}', space=sflag, size = 0x4, scoped, tag = 'scoped memory for tpu_custom_call.1']
    #allocation10 [shape = 'u8[65536]{0}', space=vmem, size = 0x10000, scoped, tag = 'input window, operand 5, single buffered']
    #allocation11 [shape = 'u8[65536]{0}', space=vmem, size = 0x10000, scoped, tag = 'input window, operand 7, single buffered']
    #allocation12 [shape = 's32[1]{0}', space=sflag, size = 0x4, scoped, tag = 'scoped memory for tpu_custom_call.1']
    #allocation13 [shape = 'u8[131072]{0}', space=vmem, size = 0x20000, scoped, tag = 'input window, operand 8, single buffered']
    #allocation14 [shape = 'u8[65536]{0}', space=vmem, size = 0x10000, scoped, tag = 'output window, operand 0, single buffered']
    %15 = vsyncpa [#allocation3], 0
    %s16 = scalar_lea.sflag [#allocation3], 1
    %17 = vsyncpa %s16, 0
    %18 = vsyncpa [#allocation6], 0
    %s19 = scalar_lea.sflag [#allocation6], 1
    %20 = vsyncpa %s19, 0
    %21 = vsyncpa [#allocation9], 0
    %22 = vsyncpa [#allocation12], 0
    %23 = vsyncpa [#allocation4], 0
    loop: start=0, step=1, limit=8
    $region2: #{tpu_custom_call.1} parent=1 // loop_pre_header
      _
    $region3: #{tpu_custom_call.1} parent=1 // loop_header
      %s25 = sphi 0, %s29
      %p26 = scmp.ge.s32.totalorder %s25, 8
      %s35 = sphi 0, %s37
      %s38 = sphi 0, %s35
      %s39 = sphi 0, %s38
      %s55 = sphi 0, %s39
      %s61 = sphi 0, %s63
      %s64 = sphi 0, %s61
      %s65 = sphi 0, %s64
      %s81 = sphi 0, %s65
      %s87 = sphi 0, %s89
      %s90 = sphi 0, %s87
      %s91 = sphi 0, %s90
      %s107 = sphi 0, %s91
      %s111 = sphi 0, %s111
      %s113 = sphi 0, %s111
      %s114 = sphi 0, %s113
      %s128 = sphi 0, %s114
      %s132 = sphi 0, %s132
      %s134 = sphi 0, %s132
      %s135 = sphi 0, %s134
      %s149 = sphi 0, %s135
      %s153 = sphi 0, %s153
      %s155 = sphi 0, %s153
      %s156 = sphi 0, %s155
      %s170 = sphi 0, %s156
      %s174 = sphi 0, %s174
      %s176 = sphi 0, %s174
      %s177 = sphi 0, %s176
      %s191 = sphi 0, %s177
      %s195 = sphi 0, %s195
      %s197 = sphi 0, %s195
      %s198 = sphi 0, %s197
      %s212 = sphi 0, %s198
      %s216 = sphi 0, %s216
      %s218 = sphi 0, %s216
      %s219 = sphi 0, %s218
      %s233 = sphi 0, %s219
      %s237 = sphi 0, %s237
      %s239 = sphi 0, %s237
      %s240 = sphi 0, %s239
      %s254 = sphi 0, %s240
      %s258 = sphi 0, %s258
      %s260 = sphi 0, %s258
      %s261 = sphi 0, %s260
      %s275 = sphi 0, %s261
    $region4: #{tpu_custom_call.1} parent=1 // loop_header_branch
      %28 = sbr.rel (%p26) target = $region8
    $region5: #{tpu_custom_call.1} parent=1 // loop_body
      %s30 = ssub.s32 %s25, 1
      %s31 = ssub.s32 %s25, 2
      %s32 = sadd.s32 %s25, 1
      %s33 = ssub.s32 %s25, %s32
      %p34 = scmp.eq.s32.totalorder %s33, 0
      %s36 = sadd.s32 %s35, 1
      %s37 = scalar_select %p34, %s35, %s36
      %p40 = pneg %p34
      %p41 = scmp.eq.s32.totalorder %s25, 5
      %p42 = por %p40, %p41
      %p43 = scmp.ne.s32.totalorder %s35, %s38
      %p44 = scmp.eq.s32.totalorder %s25, 0
      %p45 = por %p43, %p44
      %p46 = scmp.ne.s32.totalorder %s35, %s38
      %p47 = scmp.eq.s32.totalorder %s30, 5
      %p48 = por %p46, %p47
      %p49 = scmp.ne.s32.totalorder %s38, %s39
      %p50 = scmp.eq.s32.totalorder %s30, 0
      %p51 = por %p49, %p50
      %p52 = scmp.ne.s32.totalorder %s38, %s39
      %p53 = scmp.eq.s32.totalorder %s31, 5
      %p54 = por %p52, %p53
      %p56 = scmp.ne.s32.totalorder %s39, %s55
      %p57 = scmp.eq.s32.totalorder %s31, 0
      %p58 = por %p56, %p57
      %s59 = ssub.s32 %s25, %s32
      %p60 = scmp.eq.s32.totalorder %s59, 0
      %s62 = sadd.s32 %s61, 1
      %s63 = scalar_select %p60, %s61, %s62
      %p66 = pneg %p60
      %p67 = scmp.eq.s32.totalorder %s25, 5
      %p68 = por %p66, %p67
      %p69 = scmp.ne.s32.totalorder %s61, %s64
      %p70 = scmp.eq.s32.totalorder %s25, 0
      %p71 = por %p69, %p70
      %p72 = scmp.ne.s32.totalorder %s61, %s64
      %p73 = scmp.eq.s32.totalorder %s30, 5
      %p74 = por %p72, %p73
      %p75 = scmp.ne.s32.totalorder %s64, %s65
      %p76 = scmp.eq.s32.totalorder %s30, 0
      %p77 = por %p75, %p76
      %p78 = scmp.ne.s32.totalorder %s64, %s65
      %p79 = scmp.eq.s32.totalorder %s31, 5
      %p80 = por %p78, %p79
      %p82 = scmp.ne.s32.totalorder %s65, %s81
      %p83 = scmp.eq.s32.totalorder %s31, 0
      %p84 = por %p82, %p83
      %s85 = ssub.s32 %s25, %s32
      %p86 = scmp.eq.s32.totalorder %s85, 0
      %s88 = sadd.s32 %s87, 1
      %s89 = scalar_select %p86, %s87, %s88
      %p92 = pneg %p86
      %p93 = scmp.eq.s32.totalorder %s25, 5
      %p94 = por %p92, %p93
      %p95 = scmp.ne.s32.totalorder %s87, %s90
      %p96 = scmp.eq.s32.totalorder %s25, 0
      %p97 = por %p95, %p96
      %p98 = scmp.ne.s32.totalorder %s87, %s90
      %p99 = scmp.eq.s32.totalorder %s30, 5
      %p100 = por %p98, %p99
      %p101 = scmp.ne.s32.totalorder %s90, %s91
      %p102 = scmp.eq.s32.totalorder %s30, 0
      %p103 = por %p101, %p102
      %p104 = scmp.ne.s32.totalorder %s90, %s91
      %p105 = scmp.eq.s32.totalorder %s31, 5
      %p106 = por %p104, %p105
      %p108 = scmp.ne.s32.totalorder %s91, %s107
      %p109 = scmp.eq.s32.totalorder %s31, 0
      %p110 = por %p108, %p109
      %s112 = sadd.s32 %s111, 1
      %p115 = scmp.eq.s32.totalorder %s25, 5
      %p116 = scmp.ne.s32.totalorder %s111, %s113
      %p117 = scmp.eq.s32.totalorder %s25, 0
      %p118 = por %p116, %p117
      %p119 = scmp.ne.s32.totalorder %s111, %s113
      %p120 = scmp.eq.s32.totalorder %s30, 5
      %p121 = por %p119, %p120
      %p122 = scmp.ne.s32.totalorder %s113, %s114
      %p123 = scmp.eq.s32.totalorder %s30, 0
      %p124 = por %p122, %p123
      %p125 = scmp.ne.s32.totalorder %s113, %s114
      %p126 = scmp.eq.s32.totalorder %s31, 5
      %p127 = por %p125, %p126
      %p129 = scmp.ne.s32.totalorder %s114, %s128
      %p130 = scmp.eq.s32.totalorder %s31, 0
      %p131 = por %p129, %p130
      %s133 = sadd.s32 %s132, 1
      %p136 = scmp.eq.s32.totalorder %s25, 5
      %p137 = scmp.ne.s32.totalorder %s132, %s134
      %p138 = scmp.eq.s32.totalorder %s25, 0
      %p139 = por %p137, %p138
      %p140 = scmp.ne.s32.totalorder %s132, %s134
      %p141 = scmp.eq.s32.totalorder %s30, 5
      %p142 = por %p140, %p141
      %p143 = scmp.ne.s32.totalorder %s134, %s135
      %p144 = scmp.eq.s32.totalorder %s30, 0
      %p145 = por %p143, %p144
      %p146 = scmp.ne.s32.totalorder %s134, %s135
      %p147 = scmp.eq.s32.totalorder %s31, 5
      %p148 = por %p146, %p147
      %p150 = scmp.ne.s32.totalorder %s135, %s149
      %p151 = scmp.eq.s32.totalorder %s31, 0
      %p152 = por %p150, %p151
      %s154 = sadd.s32 %s153, 1
      %p157 = scmp.eq.s32.totalorder %s25, 5
      %p158 = scmp.ne.s32.totalorder %s153, %s155
      %p159 = scmp.eq.s32.totalorder %s25, 0
      %p160 = por %p158, %p159
      %p161 = scmp.ne.s32.totalorder %s153, %s155
      %p162 = scmp.eq.s32.totalorder %s30, 5
      %p163 = por %p161, %p162
      %p164 = scmp.ne.s32.totalorder %s155, %s156
      %p165 = scmp.eq.s32.totalorder %s30, 0
      %p166 = por %p164, %p165
      %p167 = scmp.ne.s32.totalorder %s155, %s156
      %p168 = scmp.eq.s32.totalorder %s31, 5
      %p169 = por %p167, %p168
      %p171 = scmp.ne.s32.totalorder %s156, %s170
      %p172 = scmp.eq.s32.totalorder %s31, 0
      %p173 = por %p171, %p172
      %s175 = sadd.s32 %s174, 1
      %p178 = scmp.eq.s32.totalorder %s25, 5
      %p179 = scmp.ne.s32.totalorder %s174, %s176
      %p180 = scmp.eq.s32.totalorder %s25, 0
      %p181 = por %p179, %p180
      %p182 = scmp.ne.s32.totalorder %s174, %s176
      %p183 = scmp.eq.s32.totalorder %s30, 5
      %p184 = por %p182, %p183
      %p185 = scmp.ne.s32.totalorder %s176, %s177
      %p186 = scmp.eq.s32.totalorder %s30, 0
      %p187 = por %p185, %p186
      %p188 = scmp.ne.s32.totalorder %s176, %s177
      %p189 = scmp.eq.s32.totalorder %s31, 5
      %p190 = por %p188, %p189
      %p192 = scmp.ne.s32.totalorder %s177, %s191
      %p193 = scmp.eq.s32.totalorder %s31, 0
      %p194 = por %p192, %p193
      %s196 = sadd.s32 %s195, 1
      %p199 = scmp.eq.s32.totalorder %s25, 5
      %p200 = scmp.ne.s32.totalorder %s195, %s197
      %p201 = scmp.eq.s32.totalorder %s25, 0
      %p202 = por %p200, %p201
      %p203 = scmp.ne.s32.totalorder %s195, %s197
      %p204 = scmp.eq.s32.totalorder %s30, 5
      %p205 = por %p203, %p204
      %p206 = scmp.ne.s32.totalorder %s197, %s198
      %p207 = scmp.eq.s32.totalorder %s30, 0
      %p208 = por %p206, %p207
      %p209 = scmp.ne.s32.totalorder %s197, %s198
      %p210 = scmp.eq.s32.totalorder %s31, 5
      %p211 = por %p209, %p210
      %p213 = scmp.ne.s32.totalorder %s198, %s212
      %p214 = scmp.eq.s32.totalorder %s31, 0
      %p215 = por %p213, %p214
      %s217 = sadd.s32 %s216, 1
      %p220 = scmp.eq.s32.totalorder %s25, 5
      %p221 = scmp.ne.s32.totalorder %s216, %s218
      %p222 = scmp.eq.s32.totalorder %s25, 0
      %p223 = por %p221, %p222
      %p224 = scmp.ne.s32.totalorder %s216, %s218
      %p225 = scmp.eq.s32.totalorder %s30, 5
      %p226 = por %p224, %p225
      %p227 = scmp.ne.s32.totalorder %s218, %s219
      %p228 = scmp.eq.s32.totalorder %s30, 0
      %p229 = por %p227, %p228
      %p230 = scmp.ne.s32.totalorder %s218, %s219
      %p231 = scmp.eq.s32.totalorder %s31, 5
      %p232 = por %p230, %p231
      %p234 = scmp.ne.s32.totalorder %s219, %s233
      %p235 = scmp.eq.s32.totalorder %s31, 0
      %p236 = por %p234, %p235
      %s238 = sadd.s32 %s237, 1
      %p241 = scmp.eq.s32.totalorder %s25, 5
      %p242 = scmp.ne.s32.totalorder %s237, %s239
      %p243 = scmp.eq.s32.totalorder %s25, 0
      %p244 = por %p242, %p243
      %p245 = scmp.ne.s32.totalorder %s237, %s239
      %p246 = scmp.eq.s32.totalorder %s30, 5
      %p247 = por %p245, %p246
      %p248 = scmp.ne.s32.totalorder %s239, %s240
      %p249 = scmp.eq.s32.totalorder %s30, 0
      %p250 = por %p248, %p249
      %p251 = scmp.ne.s32.totalorder %s239, %s240
      %p252 = scmp.eq.s32.totalorder %s31, 5
      %p253 = por %p251, %p252
      %p255 = scmp.ne.s32.totalorder %s240, %s254
      %p256 = scmp.eq.s32.totalorder %s31, 0
      %p257 = por %p255, %p256
      %s259 = sadd.s32 %s258, 1
      %p262 = scmp.eq.s32.totalorder %s25, 5
      %p263 = scmp.ne.s32.totalorder %s258, %s260
      %p264 = scmp.eq.s32.totalorder %s25, 0
      %p265 = por %p263, %p264
      %p266 = scmp.ne.s32.totalorder %s258, %s260
      %p267 = scmp.eq.s32.totalorder %s30, 5
      %p268 = por %p266, %p267
      %p269 = scmp.ne.s32.totalorder %s260, %s261
      %p270 = scmp.eq.s32.totalorder %s30, 0
      %p271 = por %p269, %p270
      %p272 = scmp.ne.s32.totalorder %s260, %s261
      %p273 = scmp.eq.s32.totalorder %s31, 5
      %p274 = por %p272, %p273
      %p276 = scmp.ne.s32.totalorder %s261, %s275
      %p277 = scmp.eq.s32.totalorder %s31, 0
      %p278 = por %p276, %p277
      %p279 = scmp.le.s32.totalorder 1, %s25
      %p280 = scmp.lt.s32.totalorder %s25, 7
      %p281 = pnand %p279, %p280
      %p282 = pneg %p281
      // Predicated region
      $region9: #{tpu_custom_call.1} parent=5 // pred_check
        _
      $region10: #{tpu_custom_call.1} parent=5 // pred_check_branch
        %284 = sbr.rel (%p281) target = $region12
      $region11: #{tpu_custom_call.1} parent=5 // pred_region
        %s285 = ssub.s32 %s25, 1
        // Predicated region
        $region13: #{tpu_custom_call.1} parent=11 // pred_check
          %p286 = pneg %p124
        $region14: #{tpu_custom_call.1} parent=11 // pred_check_branch
          %288 = sbr.rel (%p286) target = $region16
        $region15: #{tpu_custom_call.1} parent=11 // pred_region
          %s290 = ssub.s32 4096, 4096
          %291 = vsyncadd [#allocation9], %s290
          %s292 = sshll.u32 [#allocation8], 4
          %s293 = int_to_ptr.vmem [resolvable:$true] %s292
          %298 = dma.hbm_to_vmem [thread:$0]  %s3, 4096, %s293, [#allocation9], 128, 128, 8
        $region16: #{tpu_custom_call.1} parent=11 // pred_fallthru
          _
        // Predicated region
        $region17: #{tpu_custom_call.1} parent=11 // pred_check
          %p299 = pneg %p145
        $region18: #{tpu_custom_call.1} parent=11 // pred_check_branch
          %301 = sbr.rel (%p299) target = $region20
        $region19: #{tpu_custom_call.1} parent=11 // pred_region
          _
        $region20: #{tpu_custom_call.1} parent=11 // pred_fallthru
          _
        // Predicated region
        $region21: #{tpu_custom_call.1} parent=11 // pred_check
          %p302 = pneg %p166
        $region22: #{tpu_custom_call.1} parent=11 // pred_check_branch
          %304 = sbr.rel (%p302) target = $region24
        $region23: #{tpu_custom_call.1} parent=11 // pred_region
          %s306 = ssub.s32 2048, 2048
          %307 = vsyncadd [#allocation9], %s306
          %s308 = sshll.u32 [#allocation10], 4
          %s309 = int_to_ptr.vmem [resolvable:$true] %s308
          %314 = dma.hbm_to_vmem [thread:$0]  %s5, 2048, %s309, [#allocation9], 128, 128, 8
        $region24: #{tpu_custom_call.1} parent=11 // pred_fallthru
          _
        // Predicated region
        $region25: #{tpu_custom_call.1} parent=11 // pred_check
          %p315 = pneg %p187
        $region26: #{tpu_custom_call.1} parent=11 // pred_check_branch
          %317 = sbr.rel (%p315) target = $region28
        $region27: #{tpu_custom_call.1} parent=11 // pred_region
          _
        $region28: #{tpu_custom_call.1} parent=11 // pred_fallthru
          _
        // Predicated region
        $region29: #{tpu_custom_call.1} parent=11 // pred_check
          %p318 = pneg %p208
        $region30: #{tpu_custom_call.1} parent=11 // pred_check_branch
          %320 = sbr.rel (%p318) target = $region32
        $region31: #{tpu_custom_call.1} parent=11 // pred_region
          %s322 = ssub.s32 2048, 2048
          %323 = vsyncadd [#allocation12], %s322
          %s324 = sshll.u32 [#allocation11], 4
          %s325 = int_to_ptr.vmem [resolvable:$true] %s324
          %330 = dma.hbm_to_vmem [thread:$0]  %s7, 2048, %s325, [#allocation12], 128, 128, 8
        $region32: #{tpu_custom_call.1} parent=11 // pred_fallthru
          _
        // Predicated region
        $region33: #{tpu_custom_call.1} parent=11 // pred_check
          %p331 = pneg %p229
        $region34: #{tpu_custom_call.1} parent=11 // pred_check_branch
          %333 = sbr.rel (%p331) target = $region36
        $region35: #{tpu_custom_call.1} parent=11 // pred_region
          %s335 = ssub.s32 4096, 4096
          %336 = vsyncadd [#allocation12], %s335
          %s337 = sshll.u32 [#allocation13], 4
          %s338 = int_to_ptr.vmem [resolvable:$true] %s337
          %343 = dma.hbm_to_vmem [thread:$0]  %s8, 4096, %s338, [#allocation12], 128, 128, 8
        $region36: #{tpu_custom_call.1} parent=11 // pred_fallthru
          _
        // Predicated region
        $region37: #{tpu_custom_call.1} parent=11 // pred_check
          %p344 = pneg %p250
        $region38: #{tpu_custom_call.1} parent=11 // pred_check_branch
          %346 = sbr.rel (%p344) target = $region40
        $region39: #{tpu_custom_call.1} parent=11 // pred_region
          _
        $region40: #{tpu_custom_call.1} parent=11 // pred_fallthru
          _
      $region12: #{tpu_custom_call.1} parent=5 // pred_fallthru
        _
      %p347 = scmp.lt.s32.totalorder %s25, 6
      // Predicated region
      $region41: #{tpu_custom_call.1} parent=5 // pred_check
        %p348 = pneg %p347
      $region42: #{tpu_custom_call.1} parent=5 // pred_check_branch
        %350 = sbr.rel (%p348) target = $region44
      $region43: #{tpu_custom_call.1} parent=5 // pred_region
        // Predicated region
        $region45: #{tpu_custom_call.1} parent=43 // pred_check
          %p351 = pneg %p45
        $region46: #{tpu_custom_call.1} parent=43 // pred_check_branch
          %353 = sbr.rel (%p351) target = $region48
        $region47: #{tpu_custom_call.1} parent=43 // pred_region
          %s354 = sand.u32 %s35, 1
          %s355 = scalar_lea.sflag [#allocation3], %s354
          %s356 = sand.u32 %s35, 1
          %s357 = smul.addr %s356, 8
          %s358 = scalar_lea.vmem [#allocation2], %s357
          %s360 = ssub.s32 128, 128
          %361 = vsyncadd %s355, %s360
          %s362 = smul.addr %s25, 128
          %s363 = scalar_lea.hbm %s0, %s362
          %s365 = sshll.u32 %s358, 4
          %s366 = int_to_ptr.vmem [resolvable:$true] %s365
          %368 = dma.hbm_to_vmem [thread:$0]  %s363, 128, %s366, %s355
        $region48: #{tpu_custom_call.1} parent=43 // pred_fallthru
          _
        // Predicated region
        $region49: #{tpu_custom_call.1} parent=43 // pred_check
          %p369 = pneg %p71
        $region50: #{tpu_custom_call.1} parent=43 // pred_check_branch
          %371 = sbr.rel (%p369) target = $region52
        $region51: #{tpu_custom_call.1} parent=43 // pred_region
          %s372 = sand.u32 %s25, 1
          %s373 = scalar_lea.sflag [#allocation6], %s372
          %s374 = sand.u32 %s61, 1
          %s375 = smul.addr %s374, 8
          %s376 = scalar_lea.vmem [#allocation5], %s375
          %s378 = ssub.s32 128, 128
          %379 = vsyncadd %s373, %s378
          %s380 = smul.addr %s25, 128
          %s381 = scalar_lea.hbm %s1, %s380
          %s383 = sshll.u32 %s376, 4
          %s384 = int_to_ptr.vmem [resolvable:$true] %s383
          %386 = dma.hbm_to_vmem [thread:$0]  %s381, 128, %s384, %s373
        $region52: #{tpu_custom_call.1} parent=43 // pred_fallthru
          _
        // Predicated region
        $region53: #{tpu_custom_call.1} parent=43 // pred_check
          %p387 = pneg %p97
        $region54: #{tpu_custom_call.1} parent=43 // pred_check_branch
          %389 = sbr.rel (%p387) target = $region56
        $region55: #{tpu_custom_call.1} parent=43 // pred_region
          %s390 = sand.u32 %s25, 1
          %s391 = scalar_lea.sflag [#allocation6], %s390
          %s392 = sand.u32 %s87, 1
          %s393 = scalar_lea.vmem [#allocation7], %s392
          %s395 = ssub.s32 16, 16
          %396 = vsyncadd %s391, %s395
          %s397 = smul.addr %s25, 16
          %s398 = scalar_lea.hbm %s2, %s397
          %s400 = sshll.u32 %s393, 4
          %s401 = int_to_ptr.vmem [resolvable:$true] %s400
          %403 = dma.hbm_to_vmem [thread:$0]  %s398, 16, %s401, %s391
        $region56: #{tpu_custom_call.1} parent=43 // pred_fallthru
          _
      $region44: #{tpu_custom_call.1} parent=5 // pred_fallthru
        _
      %p404 = scmp.le.s32.totalorder 1, %s25
      %p405 = scmp.lt.s32.totalorder %s25, 7
      %p406 = pnand %p404, %p405
      %p407 = pneg %p406
      // Predicated region
      $region57: #{tpu_custom_call.1} parent=5 // pred_check
        _
      $region58: #{tpu_custom_call.1} parent=5 // pred_check_branch
        %409 = sbr.rel (%p406) target = $region60
      $region59: #{tpu_custom_call.1} parent=5 // pred_region
        %s410 = ssub.s32 %s25, 1
        %s411 = sand.u32 %s38, 1
        %s412 = scalar_lea.sflag [#allocation3], %s411
        %s413 = sand.u32 %s38, 1
        %s414 = smul.addr %s413, 8
        %s415 = scalar_lea.vmem [#allocation2], %s414
        // Predicated region
        $region61: #{tpu_custom_call.1} parent=59 // pred_check
          %p416 = pneg %p51
        $region62: #{tpu_custom_call.1} parent=59 // pred_check_branch
          %418 = sbr.rel (%p416) target = $region64
        $region63: #{tpu_custom_call.1} parent=59 // pred_region
          %419 = dma.done %s412, 128
        $region64: #{tpu_custom_call.1} parent=59 // pred_fallthru
          _
        %s420 = sand.u32 %s30, 1
        %s421 = scalar_lea.sflag [#allocation6], %s420
        %s422 = sand.u32 %s64, 1
        %s423 = smul.addr %s422, 8
        %s424 = scalar_lea.vmem [#allocation5], %s423
        // Predicated region
        $region65: #{tpu_custom_call.1} parent=59 // pred_check
          %p425 = pneg %p77
        $region66: #{tpu_custom_call.1} parent=59 // pred_check_branch
          %427 = sbr.rel (%p425) target = $region68
        $region67: #{tpu_custom_call.1} parent=59 // pred_region
          %428 = dma.done %s421, 128
        $region68: #{tpu_custom_call.1} parent=59 // pred_fallthru
          _
        %s429 = sand.u32 %s30, 1
        %s430 = scalar_lea.sflag [#allocation6], %s429
        %s431 = sand.u32 %s90, 1
        %s432 = scalar_lea.vmem [#allocation7], %s431
        // Predicated region
        $region69: #{tpu_custom_call.1} parent=59 // pred_check
          %p433 = pneg %p103
        $region70: #{tpu_custom_call.1} parent=59 // pred_check_branch
          %435 = sbr.rel (%p433) target = $region72
        $region71: #{tpu_custom_call.1} parent=59 // pred_region
          %436 = dma.done %s430, 16
        $region72: #{tpu_custom_call.1} parent=59 // pred_fallthru
          _
        // Predicated region
        $region73: #{tpu_custom_call.1} parent=59 // pred_check
          %p437 = pneg %p124
        $region74: #{tpu_custom_call.1} parent=59 // pred_check_branch
          %439 = sbr.rel (%p437) target = $region76
        $region75: #{tpu_custom_call.1} parent=59 // pred_region
          %440 = dma.done [#allocation9], 4096
        $region76: #{tpu_custom_call.1} parent=59 // pred_fallthru
          _
        // Predicated region
        $region77: #{tpu_custom_call.1} parent=59 // pred_check
          %p441 = pneg %p166
        $region78: #{tpu_custom_call.1} parent=59 // pred_check_branch
          %443 = sbr.rel (%p441) target = $region80
        $region79: #{tpu_custom_call.1} parent=59 // pred_region
          %444 = dma.done [#allocation9], 2048
        $region80: #{tpu_custom_call.1} parent=59 // pred_fallthru
          _
        // Predicated region
        $region81: #{tpu_custom_call.1} parent=59 // pred_check
          %p445 = pneg %p208
        $region82: #{tpu_custom_call.1} parent=59 // pred_check_branch
          %447 = sbr.rel (%p445) target = $region84
        $region83: #{tpu_custom_call.1} parent=59 // pred_region
          %448 = dma.done [#allocation12], 2048
        $region84: #{tpu_custom_call.1} parent=59 // pred_fallthru
          _
        // Predicated region
        $region85: #{tpu_custom_call.1} parent=59 // pred_check
          %p449 = pneg %p229
        $region86: #{tpu_custom_call.1} parent=59 // pred_check_branch
          %451 = sbr.rel (%p449) target = $region88
        $region87: #{tpu_custom_call.1} parent=59 // pred_region
          %452 = dma.done [#allocation12], 4096
        $region88: #{tpu_custom_call.1} parent=59 // pred_fallthru
          _
        %s453 = sand.u32 %s38, 1
        %s454 = scalar_lea.sflag [#allocation3], %s453
        %s455 = sand.u32 %s38, 1
        %s456 = smul.addr %s455, 8
        %s457 = scalar_lea.vmem [#allocation2], %s456
        %p458 = pneg %p51
        %p459 = pneg %p48
        %s460 = sand.u32 %s30, 1
        %s461 = scalar_lea.sflag [#allocation6], %s460
        %s462 = sand.u32 %s64, 1
        %s463 = smul.addr %s462, 8
        %s464 = scalar_lea.vmem [#allocation5], %s463
        %p465 = pneg %p77
        %p466 = pneg %p74
        %s467 = sand.u32 %s30, 1
        %s468 = scalar_lea.sflag [#allocation6], %s467
        %s469 = sand.u32 %s90, 1
        %s470 = scalar_lea.vmem [#allocation7], %s469
        %p471 = pneg %p103
        %p472 = pneg %p100
        %p473 = pneg %p124
        %p474 = pneg %p121
        %p475 = pneg %p145
        %p476 = pneg %p142
        %p477 = pneg %p166
        %p478 = pneg %p163
        %p479 = pneg %p187
        %p480 = pneg %p184
        %p481 = pneg %p208
        %p482 = pneg %p205
        %p483 = pneg %p229
        %p484 = pneg %p226
        %p485 = pneg %p250
        %p486 = pneg %p247
        %p487 = pneg %p271
        %p488 = pneg %p268
        %p489 = scmp.eq.s32.totalorder %s30, 0
        // Predicated region
        $region89: #{tpu_custom_call.1} parent=59 // pred_check
          %p490 = pneg %p489
        $region90: #{tpu_custom_call.1} parent=59 // pred_check_branch
          %492 = sbr.rel (%p490) target = $region92
        $region91: #{tpu_custom_call.1} parent=59 // pred_region
          %493 = vst [vmem:[#allocation14] sm:$0xff] 0.0
          %494 = vst [vmem:[#allocation14 + $0x8] sm:$0xff] 0.0
          %495 = vst [vmem:[#allocation14 + $0x10] sm:$0xff] 0.0
          %496 = vst [vmem:[#allocation14 + $0x18] sm:$0xff] 0.0
          %497 = vst [vmem:[#allocation14 + $0x20] sm:$0xff] 0.0
          %498 = vst [vmem:[#allocation14 + $0x28] sm:$0xff] 0.0
          %499 = vst [vmem:[#allocation14 + $0x30] sm:$0xff] 0.0
          %500 = vst [vmem:[#allocation14 + $0x38] sm:$0xff] 0.0
          %501 = vst [vmem:[#allocation14 + $0x40] sm:$0xff] 0.0
          %502 = vst [vmem:[#allocation14 + $0x48] sm:$0xff] 0.0
          %503 = vst [vmem:[#allocation14 + $0x50] sm:$0xff] 0.0
          %504 = vst [vmem:[#allocation14 + $0x58] sm:$0xff] 0.0
          %505 = vst [vmem:[#allocation14 + $0x60] sm:$0xff] 0.0
          %506 = vst [vmem:[#allocation14 + $0x68] sm:$0xff] 0.0
          %507 = vst [vmem:[#allocation14 + $0x70] sm:$0xff] 0.0
          %508 = vst [vmem:[#allocation14 + $0x78] sm:$0xff] 0.0
        $region92: #{tpu_custom_call.1} parent=59 // pred_fallthru
          _
        %v509 = vld [vmem:[%s415] sm:$0xff]
        %v510 = vld [vmem:[%s424] sm:$0xff]
        %v511 = vld [vmem:[%s432] sm:$0x1]
        %v512 = vld [vmem:[#allocation14] sm:$0xff]
        %v513 = vld [vmem:[#allocation14 + $0x8] sm:$0xff]
        %v514 = vld [vmem:[#allocation14 + $0x10] sm:$0xff]
        %v515 = vld [vmem:[#allocation14 + $0x18] sm:$0xff]
        %v516 = vld [vmem:[#allocation14 + $0x20] sm:$0xff]
        %v517 = vld [vmem:[#allocation14 + $0x28] sm:$0xff]
        %v518 = vld [vmem:[#allocation14 + $0x30] sm:$0xff]
        %v519 = vld [vmem:[#allocation14 + $0x38] sm:$0xff]
        %v520 = vld [vmem:[#allocation14 + $0x40] sm:$0xff]
        %v521 = vld [vmem:[#allocation14 + $0x48] sm:$0xff]
        %v522 = vld [vmem:[#allocation14 + $0x50] sm:$0xff]
        %v523 = vld [vmem:[#allocation14 + $0x58] sm:$0xff]
        %v524 = vld [vmem:[#allocation14 + $0x60] sm:$0xff]
        %v525 = vld [vmem:[#allocation14 + $0x68] sm:$0xff]
        %v526 = vld [vmem:[#allocation14 + $0x70] sm:$0xff]
        %v527 = vld [vmem:[#allocation14 + $0x78] sm:$0xff]
        %v528 = vlaneseq
        %v529 = vand.u32 %v528, 127
        %v530 = vlaneseq
        %v531 = vshrl.u32 %v530, 7
        %v532 = vsub.s32 0, %v531
        %v533 = vrot.slane %v510, %v532
        %535 = vbcast.lane.b32.xlu0 %v533, 256
        %v536 = vpop.permute.xlu0 %535
        %s538 = sor.u32 256, 8
        %539 = vbcast.lane.b32.xlu0 %v533, %s538
        %v540 = vpop.permute.xlu0 %539
        %s542 = sor.u32 256, 16
        %543 = vbcast.lane.b32.xlu0 %v533, %s542
        %v544 = vpop.permute.xlu0 %543
        %s546 = sor.u32 256, 24
        %547 = vbcast.lane.b32.xlu0 %v533, %s546
        %v548 = vpop.permute.xlu0 %547
        %v549 = vlaneseq
        %v550 = vshrl.u32 %v549, 7
        %v551 = vsub.s32 1, %v550
        %v552 = vrot.slane %v510, %v551
        %554 = vbcast.lane.b32.xlu0 %v552, 256
        %v555 = vpop.permute.xlu0 %554
        %s557 = sor.u32 256, 8
        %558 = vbcast.lane.b32.xlu0 %v552, %s557
        %v559 = vpop.permute.xlu0 %558
        %s561 = sor.u32 256, 16
        %562 = vbcast.lane.b32.xlu0 %v552, %s561
        %v563 = vpop.permute.xlu0 %562
        %s565 = sor.u32 256, 24
        %566 = vbcast.lane.b32.xlu0 %v552, %s565
        %v567 = vpop.permute.xlu0 %566
        %v568 = vlaneseq
        %v569 = vshrl.u32 %v568, 7
        %v570 = vsub.s32 2, %v569
        %v571 = vrot.slane %v510, %v570
        %573 = vbcast.lane.b32.xlu0 %v571, 256
        %v574 = vpop.permute.xlu0 %573
        %s576 = sor.u32 256, 8
        %577 = vbcast.lane.b32.xlu0 %v571, %s576
        %v578 = vpop.permute.xlu0 %577
        %s580 = sor.u32 256, 16
        %581 = vbcast.lane.b32.xlu0 %v571, %s580
        %v582 = vpop.permute.xlu0 %581
        %s584 = sor.u32 256, 24
        %585 = vbcast.lane.b32.xlu0 %v571, %s584
        %v586 = vpop.permute.xlu0 %585
        %v587 = vlaneseq
        %v588 = vshrl.u32 %v587, 7
        %v589 = vsub.s32 3, %v588
        %v590 = vrot.slane %v510, %v589
        %592 = vbcast.lane.b32.xlu0 %v590, 256
        %v593 = vpop.permute.xlu0 %592
        %s595 = sor.u32 256, 8
        %596 = vbcast.lane.b32.xlu0 %v590, %s595
        %v597 = vpop.permute.xlu0 %596
        %s599 = sor.u32 256, 16
        %600 = vbcast.lane.b32.xlu0 %v590, %s599
        %v601 = vpop.permute.xlu0 %600
        %s603 = sor.u32 256, 24
        %604 = vbcast.lane.b32.xlu0 %v590, %s603
        %v605 = vpop.permute.xlu0 %604
        %v606 = vlaneseq
        %v607 = vshrl.u32 %v606, 7
        %v608 = vsub.s32 4, %v607
        %v609 = vrot.slane %v510, %v608
        %611 = vbcast.lane.b32.xlu0 %v609, 256
        %v612 = vpop.permute.xlu0 %611
        %s614 = sor.u32 256, 8
        %615 = vbcast.lane.b32.xlu0 %v609, %s614
        %v616 = vpop.permute.xlu0 %615
        %s618 = sor.u32 256, 16
        %619 = vbcast.lane.b32.xlu0 %v609, %s618
        %v620 = vpop.permute.xlu0 %619
        %s622 = sor.u32 256, 24
        %623 = vbcast.lane.b32.xlu0 %v609, %s622
        %v624 = vpop.permute.xlu0 %623
        %v625 = vlaneseq
        %v626 = vshrl.u32 %v625, 7
        %v627 = vsub.s32 5, %v626
        %v628 = vrot.slane %v510, %v627
        %630 = vbcast.lane.b32.xlu0 %v628, 256
        %v631 = vpop.permute.xlu0 %630
        %s633 = sor.u32 256, 8
        %634 = vbcast.lane.b32.xlu0 %v628, %s633
        %v635 = vpop.permute.xlu0 %634
        %s637 = sor.u32 256, 16
        %638 = vbcast.lane.b32.xlu0 %v628, %s637
        %v639 = vpop.permute.xlu0 %638
        %s641 = sor.u32 256, 24
        %642 = vbcast.lane.b32.xlu0 %v628, %s641
        %v643 = vpop.permute.xlu0 %642
        %v644 = vlaneseq
        %v645 = vshrl.u32 %v644, 7
        %v646 = vsub.s32 6, %v645
        %v647 = vrot.slane %v510, %v646
        %649 = vbcast.lane.b32.xlu0 %v647, 256
        %v650 = vpop.permute.xlu0 %649
        %s652 = sor.u32 256, 8
        %653 = vbcast.lane.b32.xlu0 %v647, %s652
        %v654 = vpop.permute.xlu0 %653
        %s656 = sor.u32 256, 16
        %657 = vbcast.lane.b32.xlu0 %v647, %s656
        %v658 = vpop.permute.xlu0 %657
        %s660 = sor.u32 256, 24
        %661 = vbcast.lane.b32.xlu0 %v647, %s660
        %v662 = vpop.permute.xlu0 %661
        %v663 = vlaneseq
        %v664 = vshrl.u32 %v663, 7
        %v665 = vsub.s32 7, %v664
        %v666 = vrot.slane %v510, %v665
        %668 = vbcast.lane.b32.xlu0 %v666, 256
        %v669 = vpop.permute.xlu0 %668
        %s671 = sor.u32 256, 8
        %672 = vbcast.lane.b32.xlu0 %v666, %s671
        %v673 = vpop.permute.xlu0 %672
        %s675 = sor.u32 256, 16
        %676 = vbcast.lane.b32.xlu0 %v666, %s675
        %v677 = vpop.permute.xlu0 %676
        %s679 = sor.u32 256, 24
        %680 = vbcast.lane.b32.xlu0 %v666, %s679
        %v681 = vpop.permute.xlu0 %680
        %vm682 = vcmp.eq.s32.totalorder %v529, %v536
        %vm683 = vcmp.eq.s32.totalorder %v529, %v540
        %vm684 = vcmp.eq.s32.totalorder %v529, %v544
        %vm685 = vcmp.eq.s32.totalorder %v529, %v548
        %vm686 = vcmp.eq.s32.totalorder %v529, %v555
        %vm687 = vcmp.eq.s32.totalorder %v529, %v559
        %vm688 = vcmp.eq.s32.totalorder %v529, %v563
        %vm689 = vcmp.eq.s32.totalorder %v529, %v567
        %vm690 = vcmp.eq.s32.totalorder %v529, %v574
        %vm691 = vcmp.eq.s32.totalorder %v529, %v578
        %vm692 = vcmp.eq.s32.totalorder %v529, %v582
        %vm693 = vcmp.eq.s32.totalorder %v529, %v586
        %vm694 = vcmp.eq.s32.totalorder %v529, %v593
        %vm695 = vcmp.eq.s32.totalorder %v529, %v597
        %vm696 = vcmp.eq.s32.totalorder %v529, %v601
        %vm697 = vcmp.eq.s32.totalorder %v529, %v605
        %vm698 = vcmp.eq.s32.totalorder %v529, %v612
        %vm699 = vcmp.eq.s32.totalorder %v529, %v616
        %vm700 = vcmp.eq.s32.totalorder %v529, %v620
        %vm701 = vcmp.eq.s32.totalorder %v529, %v624
        %vm702 = vcmp.eq.s32.totalorder %v529, %v631
        %vm703 = vcmp.eq.s32.totalorder %v529, %v635
        %vm704 = vcmp.eq.s32.totalorder %v529, %v639
        %vm705 = vcmp.eq.s32.totalorder %v529, %v643
        %vm706 = vcmp.eq.s32.totalorder %v529, %v650
        %vm707 = vcmp.eq.s32.totalorder %v529, %v654
        %vm708 = vcmp.eq.s32.totalorder %v529, %v658
        %vm709 = vcmp.eq.s32.totalorder %v529, %v662
        %vm710 = vcmp.eq.s32.totalorder %v529, %v669
        %vm711 = vcmp.eq.s32.totalorder %v529, %v673
        %vm712 = vcmp.eq.s32.totalorder %v529, %v677
        %vm713 = vcmp.eq.s32.totalorder %v529, %v681
        %v714 = vsel %vm682, 1, 0
        %v715 = vsel %vm683, 1, 0
        %v716 = vsel %vm684, 1, 0
        %v717 = vsel %vm685, 1, 0
        %v718 = vsel %vm686, 1, 0
        %v719 = vsel %vm687, 1, 0
        %v720 = vsel %vm688, 1, 0
        %v721 = vsel %vm689, 1, 0
        %v722 = vsel %vm690, 1, 0
        %v723 = vsel %vm691, 1, 0
        %v724 = vsel %vm692, 1, 0
        %v725 = vsel %vm693, 1, 0
        %v726 = vsel %vm694, 1, 0
        %v727 = vsel %vm695, 1, 0
        %v728 = vsel %vm696, 1, 0
        %v729 = vsel %vm697, 1, 0
        %v730 = vsel %vm698, 1, 0
        %v731 = vsel %vm699, 1, 0
        %v732 = vsel %vm700, 1, 0
        %v733 = vsel %vm701, 1, 0
        %v734 = vsel %vm702, 1, 0
        %v735 = vsel %vm703, 1, 0
        %v736 = vsel %vm704, 1, 0
        %v737 = vsel %vm705, 1, 0
        %v738 = vsel %vm706, 1, 0
        %v739 = vsel %vm707, 1, 0
        %v740 = vsel %vm708, 1, 0
        %v741 = vsel %vm709, 1, 0
        %v742 = vsel %vm710, 1, 0
        %v743 = vsel %vm711, 1, 0
        %v744 = vsel %vm712, 1, 0
        %v745 = vsel %vm713, 1, 0
        %v746 = vcvt.s32.f32 %v714
        %v747 = vcvt.s32.f32 %v715
        %v748 = vcvt.s32.f32 %v716
        %v749 = vcvt.s32.f32 %v717
        %v750 = vcvt.s32.f32 %v718
        %v751 = vcvt.s32.f32 %v719
        %v752 = vcvt.s32.f32 %v720
        %v753 = vcvt.s32.f32 %v721
        %v754 = vcvt.s32.f32 %v722
        %v755 = vcvt.s32.f32 %v723
        %v756 = vcvt.s32.f32 %v724
        %v757 = vcvt.s32.f32 %v725
        %v758 = vcvt.s32.f32 %v726
        %v759 = vcvt.s32.f32 %v727
        %v760 = vcvt.s32.f32 %v728
        %v761 = vcvt.s32.f32 %v729
        %v762 = vcvt.s32.f32 %v730
        %v763 = vcvt.s32.f32 %v731
        %v764 = vcvt.s32.f32 %v732
        %v765 = vcvt.s32.f32 %v733
        %v766 = vcvt.s32.f32 %v734
        %v767 = vcvt.s32.f32 %v735
        %v768 = vcvt.s32.f32 %v736
        %v769 = vcvt.s32.f32 %v737
        %v770 = vcvt.s32.f32 %v738
        %v771 = vcvt.s32.f32 %v739
        %v772 = vcvt.s32.f32 %v740
        %v773 = vcvt.s32.f32 %v741
        %v774 = vcvt.s32.f32 %v742
        %v775 = vcvt.s32.f32 %v743
        %v776 = vcvt.s32.f32 %v744
        %v777 = vcvt.s32.f32 %v745
        %778 = vmatprep.subr.mxu0 0.0
        %779 = vmatpush1.msra.mxu0 %v527
        %780 = vmatprep.subr.mxu0 0.0
        %781 = vmatpush1.msra.mxu0 %v526
        %782 = vmatprep.subr.mxu0 0.0
        %783 = vmatpush1.msra.mxu0 %v525
        %784 = vmatprep.subr.mxu0 0.0
        %785 = vmatpush1.msra.mxu0 %v524
        %786 = vmatprep.subr.mxu0 0.0
        %787 = vmatpush1.msra.mxu0 %v523
        %788 = vmatprep.subr.mxu0 0.0
        %789 = vmatpush1.msra.mxu0 %v522
        %790 = vmatprep.subr.mxu0 0.0
        %791 = vmatpush1.msra.mxu0 %v521
        %792 = vmatprep.subr.mxu0 0.0
        %793 = vmatpush1.msra.mxu0 %v520
        %794 = vmatprep.subr.mxu0 0.0
        %795 = vmatpush1.msra.mxu0 %v519
        %796 = vmatprep.subr.mxu0 0.0
        %797 = vmatpush1.msra.mxu0 %v518
        %798 = vmatprep.subr.mxu0 0.0
        %799 = vmatpush1.msra.mxu0 %v517
        %800 = vmatprep.subr.mxu0 0.0
        %801 = vmatpush1.msra.mxu0 %v516
        %802 = vmatprep.subr.mxu0 0.0
        %803 = vmatpush1.msra.mxu0 %v515
        %804 = vmatprep.subr.mxu0 0.0
        %805 = vmatpush1.msra.mxu0 %v514
        %806 = vmatprep.subr.mxu0 0.0
        %807 = vmatpush1.msra.mxu0 %v513
        %808 = vmatprep.subr.mxu0 0.0
        %809 = vmatpush1.msra.mxu0 %v512
        %810 = vmatprep.subr.mxu0 0.0
        %811 = vmatpush2.msra.mxu0 0.0
        %812 = vmatprep.subr.mxu0 0.0
        %813 = vmatpush2.msra.mxu0 0.0
        %814 = vmatprep.subr.mxu0 0.0
        %815 = vmatpush2.msra.mxu0 0.0
        %816 = vmatprep.subr.mxu0 0.0
        %817 = vmatpush2.msra.mxu0 0.0
        %818 = vmatprep.subr.mxu0 0.0
        %819 = vmatpush2.msra.mxu0 0.0
        %820 = vmatprep.subr.mxu0 0.0
        %821 = vmatpush2.msra.mxu0 0.0
        %822 = vmatprep.subr.mxu0 0.0
        %823 = vmatpush2.msra.mxu0 0.0
        %824 = vmatprep.subr.mxu0 0.0
        %825 = vmatpush2.msra.mxu0 0.0
        %826 = vmatprep.subr.mxu0 0.0
        %827 = vmatpush2.msra.mxu0 0.0
        %828 = vmatprep.subr.mxu0 0.0
        %829 = vmatpush2.msra.mxu0 0.0
        %830 = vmatprep.subr.mxu0 0.0
        %831 = vmatpush2.msra.mxu0 0.0
        %832 = vmatprep.subr.mxu0 0.0
        %833 = vmatpush2.msra.mxu0 0.0
        %834 = vmatprep.subr.mxu0 0.0
        %835 = vmatpush2.msra.mxu0 0.0
        %836 = vmatprep.subr.mxu0 0.0
        %837 = vmatpush2.msra.mxu0 0.0
        %838 = vmatprep.subr.mxu0 0.0
        %839 = vmatpush2.msra.mxu0 0.0
        %840 = vmatprep.subr.mxu0 0.0
        %841 = vmatpush2.msra.mxu0 0.0
        %842 = vmatprep.mubr.f32.mxu0 0.0
        %843 = vmatmul.mubr.f32.gmra.mxu0 %v746
        %v844 = vpop.f32.mrf.mxu0
        %v845 = vadd.f32 0.0, %v844
        %v846 = vpop.f32.mrf.mxu0
        %847 = vmatprep.mubr.f32.mxu0 0.0
        %848 = vmatmul.mubr.f32.gmra.mxu0 %v747
        %v849 = vpop.f32.mrf.mxu0
        %v850 = vadd.f32 0.0, %v849
        %v851 = vpop.f32.mrf.mxu0
        %852 = vmatprep.mubr.f32.mxu0 0.0
        %853 = vmatmul.mubr.f32.gmra.mxu0 %v748
        %v854 = vpop.f32.mrf.mxu0
        %v855 = vadd.f32 0.0, %v854
        %v856 = vpop.f32.mrf.mxu0
        %857 = vmatprep.mubr.f32.mxu0 0.0
        %858 = vmatmul.mubr.f32.gmra.mxu0 %v749
        %v859 = vpop.f32.mrf.mxu0
        %v860 = vadd.f32 0.0, %v859
        %v861 = vpop.f32.mrf.mxu0
        %862 = vmatprep.mubr.f32.mxu0 0.0
        %863 = vmatmul.mubr.f32.gmra.mxu0 %v750
        %v864 = vpop.f32.mrf.mxu0
        %v865 = vadd.f32 0.0, %v864
        %v866 = vpop.f32.mrf.mxu0
        %867 = vmatprep.mubr.f32.mxu0 0.0
        %868 = vmatmul.mubr.f32.gmra.mxu0 %v751
        %v869 = vpop.f32.mrf.mxu0
        %v870 = vadd.f32 0.0, %v869
        %v871 = vpop.f32.mrf.mxu0
        %872 = vmatprep.mubr.f32.mxu0 0.0
        %873 = vmatmul.mubr.f32.gmra.mxu0 %v752
        %v874 = vpop.f32.mrf.mxu0
        %v875 = vadd.f32 0.0, %v874
        %v876 = vpop.f32.mrf.mxu0
        %877 = vmatprep.mubr.f32.mxu0 0.0
        %878 = vmatmul.mubr.f32.gmra.mxu0 %v753
        %v879 = vpop.f32.mrf.mxu0
        %v880 = vadd.f32 0.0, %v879
        %v881 = vpop.f32.mrf.mxu0
        %882 = vmatprep.mubr.f32.mxu0 0.0
        %883 = vmatmul.mubr.f32.gmra.mxu0 %v754
        %v884 = vpop.f32.mrf.mxu0
        %v885 = vadd.f32 0.0, %v884
        %v886 = vpop.f32.mrf.mxu0
        %887 = vmatprep.mubr.f32.mxu0 0.0
        %888 = vmatmul.mubr.f32.gmra.mxu0 %v755
        %v889 = vpop.f32.mrf.mxu0
        %v890 = vadd.f32 0.0, %v889
        %v891 = vpop.f32.mrf.mxu0
        %892 = vmatprep.mubr.f32.mxu0 0.0
        %893 = vmatmul.mubr.f32.gmra.mxu0 %v756
        %v894 = vpop.f32.mrf.mxu0
        %v895 = vadd.f32 0.0, %v894
        %v896 = vpop.f32.mrf.mxu0
        %897 = vmatprep.mubr.f32.mxu0 0.0
        %898 = vmatmul.mubr.f32.gmra.mxu0 %v757
        %v899 = vpop.f32.mrf.mxu0
        %v900 = vadd.f32 0.0, %v899
        %v901 = vpop.f32.mrf.mxu0
        %902 = vmatprep.mubr.f32.mxu0 0.0
        %903 = vmatmul.mubr.f32.gmra.mxu0 %v758
        %v904 = vpop.f32.mrf.mxu0
        %v905 = vadd.f32 0.0, %v904
        %v906 = vpop.f32.mrf.mxu0
        %907 = vmatprep.mubr.f32.mxu0 0.0
        %908 = vmatmul.mubr.f32.gmra.mxu0 %v759
        %v909 = vpop.f32.mrf.mxu0
        %v910 = vadd.f32 0.0, %v909
        %v911 = vpop.f32.mrf.mxu0
        %912 = vmatprep.mubr.f32.mxu0 0.0
        %913 = vmatmul.mubr.f32.gmra.mxu0 %v760
        %v914 = vpop.f32.mrf.mxu0
        %v915 = vadd.f32 0.0, %v914
        %v916 = vpop.f32.mrf.mxu0
        %917 = vmatprep.mubr.f32.mxu0 0.0
        %918 = vmatmul.mubr.f32.gmra.mxu0 %v761
        %v919 = vpop.f32.mrf.mxu0
        %v920 = vadd.f32 0.0, %v919
        %v921 = vpop.f32.mrf.mxu0
        %922 = vmatprep.mubr.f32.mxu0 0.0
        %923 = vmatmul.mubr.f32.gmra.mxu0 %v762
        %v924 = vpop.f32.mrf.mxu0
        %v925 = vadd.f32 0.0, %v924
        %v926 = vpop.f32.mrf.mxu0
        %927 = vmatprep.mubr.f32.mxu0 0.0
        %928 = vmatmul.mubr.f32.gmra.mxu0 %v763
        %v929 = vpop.f32.mrf.mxu0
        %v930 = vadd.f32 0.0, %v929
        %v931 = vpop.f32.mrf.mxu0
        %932 = vmatprep.mubr.f32.mxu0 0.0
        %933 = vmatmul.mubr.f32.gmra.mxu0 %v764
        %v934 = vpop.f32.mrf.mxu0
        %v935 = vadd.f32 0.0, %v934
        %v936 = vpop.f32.mrf.mxu0
        %937 = vmatprep.mubr.f32.mxu0 0.0
        %938 = vmatmul.mubr.f32.gmra.mxu0 %v765
        %v939 = vpop.f32.mrf.mxu0
        %v940 = vadd.f32 0.0, %v939
        %v941 = vpop.f32.mrf.mxu0
        %942 = vmatprep.mubr.f32.mxu0 0.0
        %943 = vmatmul.mubr.f32.gmra.mxu0 %v766
        %v944 = vpop.f32.mrf.mxu0
        %v945 = vadd.f32 0.0, %v944
        %v946 = vpop.f32.mrf.mxu0
        %947 = vmatprep.mubr.f32.mxu0 0.0
        %948 = vmatmul.mubr.f32.gmra.mxu0 %v767
        %v949 = vpop.f32.mrf.mxu0
        %v950 = vadd.f32 0.0, %v949
        %v951 = vpop.f32.mrf.mxu0
        %952 = vmatprep.mubr.f32.mxu0 0.0
        %953 = vmatmul.mubr.f32.gmra.mxu0 %v768
        %v954 = vpop.f32.mrf.mxu0
        %v955 = vadd.f32 0.0, %v954
        %v956 = vpop.f32.mrf.mxu0
        %957 = vmatprep.mubr.f32.mxu0 0.0
        %958 = vmatmul.mubr.f32.gmra.mxu0 %v769
        %v959 = vpop.f32.mrf.mxu0
        %v960 = vadd.f32 0.0, %v959
        %v961 = vpop.f32.mrf.mxu0
        %962 = vmatprep.mubr.f32.mxu0 0.0
        %963 = vmatmul.mubr.f32.gmra.mxu0 %v770
        %v964 = vpop.f32.mrf.mxu0
        %v965 = vadd.f32 0.0, %v964
        %v966 = vpop.f32.mrf.mxu0
        %967 = vmatprep.mubr.f32.mxu0 0.0
        %968 = vmatmul.mubr.f32.gmra.mxu0 %v771
        %v969 = vpop.f32.mrf.mxu0
        %v970 = vadd.f32 0.0, %v969
        %v971 = vpop.f32.mrf.mxu0
        %972 = vmatprep.mubr.f32.mxu0 0.0
        %973 = vmatmul.mubr.f32.gmra.mxu0 %v772
        %v974 = vpop.f32.mrf.mxu0
        %v975 = vadd.f32 0.0, %v974
        %v976 = vpop.f32.mrf.mxu0
        %977 = vmatprep.mubr.f32.mxu0 0.0
        %978 = vmatmul.mubr.f32.gmra.mxu0 %v773
        %v979 = vpop.f32.mrf.mxu0
        %v980 = vadd.f32 0.0, %v979
        %v981 = vpop.f32.mrf.mxu0
        %982 = vmatprep.mubr.f32.mxu0 0.0
        %983 = vmatmul.mubr.f32.gmra.mxu0 %v774
        %v984 = vpop.f32.mrf.mxu0
        %v985 = vadd.f32 0.0, %v984
        %v986 = vpop.f32.mrf.mxu0
        %987 = vmatprep.mubr.f32.mxu0 0.0
        %988 = vmatmul.mubr.f32.gmra.mxu0 %v775
        %v989 = vpop.f32.mrf.mxu0
        %v990 = vadd.f32 0.0, %v989
        %v991 = vpop.f32.mrf.mxu0
        %992 = vmatprep.mubr.f32.mxu0 0.0
        %993 = vmatmul.mubr.f32.gmra.mxu0 %v776
        %v994 = vpop.f32.mrf.mxu0
        %v995 = vadd.f32 0.0, %v994
        %v996 = vpop.f32.mrf.mxu0
        %997 = vmatprep.mubr.f32.mxu0 0.0
        %998 = vmatmul.mubr.f32.gmra.mxu0 %v777
        %v999 = vpop.f32.mrf.mxu0
        %v1000 = vadd.f32 0.0, %v999
        %v1001 = vpop.f32.mrf.mxu0
        %1002 = vdwg.mxu0
        %v1003 = vadd.f32 %v845, %v850
        %v1004 = vadd.f32 %v1003, %v855
        %v1005 = vadd.f32 %v1004, %v860
        %v1006 = vrot.slane %v1005, 4
        %v1007 = vadd.f32 %v1005, %v1006
        %v1008 = vrot.slane %v1007, 2
        %v1009 = vadd.f32 %v1007, %v1008
        %v1010 = vrot.slane %v1009, 1
        %v1011 = vadd.f32 %v1009, %v1010
        %v1012 = vadd.f32 %v865, %v870
        %v1013 = vadd.f32 %v1012, %v875
        %v1014 = vadd.f32 %v1013, %v880
        %v1015 = vrot.slane %v1014, 4
        %v1016 = vadd.f32 %v1014, %v1015
        %v1017 = vrot.slane %v1016, 2
        %v1018 = vadd.f32 %v1016, %v1017
        %v1019 = vrot.slane %v1018, 1
        %v1020 = vadd.f32 %v1018, %v1019
        %v1021 = vadd.f32 %v885, %v890
        %v1022 = vadd.f32 %v1021, %v895
        %v1023 = vadd.f32 %v1022, %v900
        %v1024 = vrot.slane %v1023, 4
        %v1025 = vadd.f32 %v1023, %v1024
        %v1026 = vrot.slane %v1025, 2
        %v1027 = vadd.f32 %v1025, %v1026
        %v1028 = vrot.slane %v1027, 1
        %v1029 = vadd.f32 %v1027, %v1028
        %v1030 = vadd.f32 %v905, %v910
        %v1031 = vadd.f32 %v1030, %v915
        %v1032 = vadd.f32 %v1031, %v920
        %v1033 = vrot.slane %v1032, 4
        %v1034 = vadd.f32 %v1032, %v1033
        %v1035 = vrot.slane %v1034, 2
        %v1036 = vadd.f32 %v1034, %v1035
        %v1037 = vrot.slane %v1036, 1
        %v1038 = vadd.f32 %v1036, %v1037
        %v1039 = vadd.f32 %v925, %v930
        %v1040 = vadd.f32 %v1039, %v935
        %v1041 = vadd.f32 %v1040, %v940
        %v1042 = vrot.slane %v1041, 4
        %v1043 = vadd.f32 %v1041, %v1042
        %v1044 = vrot.slane %v1043, 2
        %v1045 = vadd.f32 %v1043, %v1044
        %v1046 = vrot.slane %v1045, 1
        %v1047 = vadd.f32 %v1045, %v1046
        %v1048 = vadd.f32 %v945, %v950
        %v1049 = vadd.f32 %v1048, %v955
        %v1050 = vadd.f32 %v1049, %v960
        %v1051 = vrot.slane %v1050, 4
        %v1052 = vadd.f32 %v1050, %v1051
        %v1053 = vrot.slane %v1052, 2
        %v1054 = vadd.f32 %v1052, %v1053
        %v1055 = vrot.slane %v1054, 1
        %v1056 = vadd.f32 %v1054, %v1055
        %v1057 = vadd.f32 %v965, %v970
        %v1058 = vadd.f32 %v1057, %v975
        %v1059 = vadd.f32 %v1058, %v980
        %v1060 = vrot.slane %v1059, 4
        %v1061 = vadd.f32 %v1059, %v1060
        %v1062 = vrot.slane %v1061, 2
        %v1063 = vadd.f32 %v1061, %v1062
        %v1064 = vrot.slane %v1063, 1
        %v1065 = vadd.f32 %v1063, %v1064
        %v1066 = vadd.f32 %v985, %v990
        %v1067 = vadd.f32 %v1066, %v995
        %v1068 = vadd.f32 %v1067, %v1000
        %v1069 = vrot.slane %v1068, 4
        %v1070 = vadd.f32 %v1068, %v1069
        %v1071 = vrot.slane %v1070, 2
        %v1072 = vadd.f32 %v1070, %v1071
        %v1073 = vrot.slane %v1072, 1
        %v1074 = vadd.f32 %v1072, %v1073
        %vm1083 = vcmask 1041409
        %v1084 = vsel %vm1083, %v1020, %v1011
        %vm1085 = vcmask 1042434
        %v1086 = vsel %vm1085, %v1029, %v1084
        %vm1087 = vcmask 1043459
        %v1088 = vsel %vm1087, %v1038, %v1086
        %vm1089 = vcmask 1044484
        %v1090 = vsel %vm1089, %v1047, %v1088
        %vm1091 = vcmask 1045509
        %v1092 = vsel %vm1091, %v1056, %v1090
        %vm1093 = vcmask 1046534
        %v1094 = vsel %vm1093, %v1065, %v1092
        %vm1095 = vcmask 1047559
        %v1096 = vsel %vm1095, %v1074, %v1094
        %v1098 = vld [vmem:[#allocation8] sm:$0xff]
        %v1099 = vld [vmem:[#allocation8 + $0x8] sm:$0xff]
        %v1100 = vld [vmem:[#allocation8 + $0x10] sm:$0xff]
        %v1101 = vld [vmem:[#allocation8 + $0x18] sm:$0xff]
        %v1102 = vld [vmem:[#allocation8 + $0x20] sm:$0xff]
        %v1103 = vld [vmem:[#allocation8 + $0x28] sm:$0xff]
        %v1104 = vld [vmem:[#allocation8 + $0x30] sm:$0xff]
        %v1105 = vld [vmem:[#allocation8 + $0x38] sm:$0xff]
        %v1106 = vld [vmem:[#allocation8 + $0x40] sm:$0xff]
        %v1107 = vld [vmem:[#allocation8 + $0x48] sm:$0xff]
        %v1108 = vld [vmem:[#allocation8 + $0x50] sm:$0xff]
        %v1109 = vld [vmem:[#allocation8 + $0x58] sm:$0xff]
        %v1110 = vld [vmem:[#allocation8 + $0x60] sm:$0xff]
        %v1111 = vld [vmem:[#allocation8 + $0x68] sm:$0xff]
        %v1112 = vld [vmem:[#allocation8 + $0x70] sm:$0xff]
        %v1113 = vld [vmem:[#allocation8 + $0x78] sm:$0xff]
        %v1114 = vld [vmem:[#allocation8 + $0x80] sm:$0xff]
        %v1115 = vld [vmem:[#allocation8 + $0x88] sm:$0xff]
        %v1116 = vld [vmem:[#allocation8 + $0x90] sm:$0xff]
        %v1117 = vld [vmem:[#allocation8 + $0x98] sm:$0xff]
        %v1118 = vld [vmem:[#allocation8 + $0xa0] sm:$0xff]
        %v1119 = vld [vmem:[#allocation8 + $0xa8] sm:$0xff]
        %v1120 = vld [vmem:[#allocation8 + $0xb0] sm:$0xff]
        %v1121 = vld [vmem:[#allocation8 + $0xb8] sm:$0xff]
        %v1122 = vld [vmem:[#allocation8 + $0xc0] sm:$0xff]
        %v1123 = vld [vmem:[#allocation8 + $0xc8] sm:$0xff]
        %v1124 = vld [vmem:[#allocation8 + $0xd0] sm:$0xff]
        %v1125 = vld [vmem:[#allocation8 + $0xd8] sm:$0xff]
        %v1126 = vld [vmem:[#allocation8 + $0xe0] sm:$0xff]
        %v1127 = vld [vmem:[#allocation8 + $0xe8] sm:$0xff]
        %v1128 = vld [vmem:[#allocation8 + $0xf0] sm:$0xff]
        %v1129 = vld [vmem:[#allocation8 + $0xf8] sm:$0xff]
        %v1130 = vld [vmem:[%s4] sm:$0x1]
        %v1132 = vlaneseq
        %v1133 = vshrl.u32 %v1132, 7
        %v1134 = vsub.s32 0, %v1133
        %v1135 = vrot.slane %v1130, %v1134
        %1137 = vmatprep.subr.mxu0 0.0
        %1138 = vmatpush1.msra.mxu0 %v1113
        %1139 = vmatprep.subr.mxu0 0.0
        %1140 = vmatpush1.msra.mxu0 %v1112
        %1141 = vmatprep.subr.mxu0 0.0
        %1142 = vmatpush1.msra.mxu0 %v1111
        %1143 = vmatprep.subr.mxu0 0.0
        %1144 = vmatpush1.msra.mxu0 %v1110
        %1145 = vmatprep.subr.mxu0 0.0
        %1146 = vmatpush1.msra.mxu0 %v1109
        %1147 = vmatprep.subr.mxu0 0.0
        %1148 = vmatpush1.msra.mxu0 %v1108
        %1149 = vmatprep.subr.mxu0 0.0
        %1150 = vmatpush1.msra.mxu0 %v1107
        %1151 = vmatprep.subr.mxu0 0.0
        %1152 = vmatpush1.msra.mxu0 %v1106
        %1153 = vmatprep.subr.mxu0 0.0
        %1154 = vmatpush1.msra.mxu0 %v1105
        %1155 = vmatprep.subr.mxu0 0.0
        %1156 = vmatpush1.msra.mxu0 %v1104
        %1157 = vmatprep.subr.mxu0 0.0
        %1158 = vmatpush1.msra.mxu0 %v1103
        %1159 = vmatprep.subr.mxu0 0.0
        %1160 = vmatpush1.msra.mxu0 %v1102
        %1161 = vmatprep.subr.mxu0 0.0
        %1162 = vmatpush1.msra.mxu0 %v1101
        %1163 = vmatprep.subr.mxu0 0.0
        %1164 = vmatpush1.msra.mxu0 %v1100
        %1165 = vmatprep.subr.mxu0 0.0
        %1166 = vmatpush1.msra.mxu0 %v1099
        %1167 = vmatprep.subr.mxu0 0.0
        %1168 = vmatpush1.msra.mxu0 %v1098
        %1169 = vmatprep.subr.mxu0 0.0
        %1170 = vmatpush2.msra.mxu0 %v1129
        %1171 = vmatprep.subr.mxu0 0.0
        %1172 = vmatpush2.msra.mxu0 %v1128
        %1173 = vmatprep.subr.mxu0 0.0
        %1174 = vmatpush2.msra.mxu0 %v1127
        %1175 = vmatprep.subr.mxu0 0.0
        %1176 = vmatpush2.msra.mxu0 %v1126
        %1177 = vmatprep.subr.mxu0 0.0
        %1178 = vmatpush2.msra.mxu0 %v1125
        %1179 = vmatprep.subr.mxu0 0.0
        %1180 = vmatpush2.msra.mxu0 %v1124
        %1181 = vmatprep.subr.mxu0 0.0
        %1182 = vmatpush2.msra.mxu0 %v1123
        %1183 = vmatprep.subr.mxu0 0.0
        %1184 = vmatpush2.msra.mxu0 %v1122
        %1185 = vmatprep.subr.mxu0 0.0
        %1186 = vmatpush2.msra.mxu0 %v1121
        %1187 = vmatprep.subr.mxu0 0.0
        %1188 = vmatpush2.msra.mxu0 %v1120
        %1189 = vmatprep.subr.mxu0 0.0
        %1190 = vmatpush2.msra.mxu0 %v1119
        %1191 = vmatprep.subr.mxu0 0.0
        %1192 = vmatpush2.msra.mxu0 %v1118
        %1193 = vmatprep.subr.mxu0 0.0
        %1194 = vmatpush2.msra.mxu0 %v1117
        %1195 = vmatprep.subr.mxu0 0.0
        %1196 = vmatpush2.msra.mxu0 %v1116
        %1197 = vmatprep.subr.mxu0 0.0
        %1198 = vmatpush2.msra.mxu0 %v1115
        %1199 = vmatprep.subr.mxu0 0.0
        %1200 = vmatpush2.msra.mxu0 %v1114
        %1201 = vmatprep.mubr.f32.mxu0 %v1096
        %1202 = vmatmul.mubr.f32.gmra.mxu0 %v509
        %v1203 = vpop.f32.mrf.mxu0
        %v1204 = vadd.f32 %v1135, %v1203
        %v1205 = vpop.f32.mrf.mxu0
        %1206 = vdwg.mxu0
        %v1207 = vxor.u32 %v1204, 2147483648
        %v1208 = vmul.f32 %v1207, 1.442695
        %v1209 = vpow.pop %v1208
        %v1210 = vadd.f32 %v1209, 1.0
        %v1211 = vrcp.pop %v1210
        %v1212 = vmul.f32 1.0, %v1211
        %v1213 = vld [vmem:[#allocation10] sm:$0xff]
        %v1214 = vld [vmem:[#allocation10 + $0x8] sm:$0xff]
        %v1215 = vld [vmem:[#allocation10 + $0x10] sm:$0xff]
        %v1216 = vld [vmem:[#allocation10 + $0x18] sm:$0xff]
        %v1217 = vld [vmem:[#allocation10 + $0x20] sm:$0xff]
        %v1218 = vld [vmem:[#allocation10 + $0x28] sm:$0xff]
        %v1219 = vld [vmem:[#allocation10 + $0x30] sm:$0xff]
        %v1220 = vld [vmem:[#allocation10 + $0x38] sm:$0xff]
        %v1221 = vld [vmem:[#allocation10 + $0x40] sm:$0xff]
        %v1222 = vld [vmem:[#allocation10 + $0x48] sm:$0xff]
        %v1223 = vld [vmem:[#allocation10 + $0x50] sm:$0xff]
        %v1224 = vld [vmem:[#allocation10 + $0x58] sm:$0xff]
        %v1225 = vld [vmem:[#allocation10 + $0x60] sm:$0xff]
        %v1226 = vld [vmem:[#allocation10 + $0x68] sm:$0xff]
        %v1227 = vld [vmem:[#allocation10 + $0x70] sm:$0xff]
        %v1228 = vld [vmem:[#allocation10 + $0x78] sm:$0xff]
        %v1229 = vld [vmem:[%s6] sm:$0x1]
        %v1231 = vlaneseq
        %v1232 = vshrl.u32 %v1231, 7
        %v1233 = vsub.s32 0, %v1232
        %v1234 = vrot.slane %v1229, %v1233
        %1236 = vmatprep.subr.mxu0 0.0
        %1237 = vmatpush1.msra.mxu0 %v1228
        %1238 = vmatprep.subr.mxu0 0.0
        %1239 = vmatpush1.msra.mxu0 %v1227
        %1240 = vmatprep.subr.mxu0 0.0
        %1241 = vmatpush1.msra.mxu0 %v1226
        %1242 = vmatprep.subr.mxu0 0.0
        %1243 = vmatpush1.msra.mxu0 %v1225
        %1244 = vmatprep.subr.mxu0 0.0
        %1245 = vmatpush1.msra.mxu0 %v1224
        %1246 = vmatprep.subr.mxu0 0.0
        %1247 = vmatpush1.msra.mxu0 %v1223
        %1248 = vmatprep.subr.mxu0 0.0
        %1249 = vmatpush1.msra.mxu0 %v1222
        %1250 = vmatprep.subr.mxu0 0.0
        %1251 = vmatpush1.msra.mxu0 %v1221
        %1252 = vmatprep.subr.mxu0 0.0
        %1253 = vmatpush1.msra.mxu0 %v1220
        %1254 = vmatprep.subr.mxu0 0.0
        %1255 = vmatpush1.msra.mxu0 %v1219
        %1256 = vmatprep.subr.mxu0 0.0
        %1257 = vmatpush1.msra.mxu0 %v1218
        %1258 = vmatprep.subr.mxu0 0.0
        %1259 = vmatpush1.msra.mxu0 %v1217
        %1260 = vmatprep.subr.mxu0 0.0
        %1261 = vmatpush1.msra.mxu0 %v1216
        %1262 = vmatprep.subr.mxu0 0.0
        %1263 = vmatpush1.msra.mxu0 %v1215
        %1264 = vmatprep.subr.mxu0 0.0
        %1265 = vmatpush1.msra.mxu0 %v1214
        %1266 = vmatprep.subr.mxu0 0.0
        %1267 = vmatpush1.msra.mxu0 %v1213
        %1268 = vmatprep.subr.mxu0 0.0
        %1269 = vmatpush2.msra.mxu0 0.0
        %1270 = vmatprep.subr.mxu0 0.0
        %1271 = vmatpush2.msra.mxu0 0.0
        %1272 = vmatprep.subr.mxu0 0.0
        %1273 = vmatpush2.msra.mxu0 0.0
        %1274 = vmatprep.subr.mxu0 0.0
        %1275 = vmatpush2.msra.mxu0 0.0
        %1276 = vmatprep.subr.mxu0 0.0
        %1277 = vmatpush2.msra.mxu0 0.0
        %1278 = vmatprep.subr.mxu0 0.0
        %1279 = vmatpush2.msra.mxu0 0.0
        %1280 = vmatprep.subr.mxu0 0.0
        %1281 = vmatpush2.msra.mxu0 0.0
        %1282 = vmatprep.subr.mxu0 0.0
        %1283 = vmatpush2.msra.mxu0 0.0
        %1284 = vmatprep.subr.mxu0 0.0
        %1285 = vmatpush2.msra.mxu0 0.0
        %1286 = vmatprep.subr.mxu0 0.0
        %1287 = vmatpush2.msra.mxu0 0.0
        %1288 = vmatprep.subr.mxu0 0.0
        %1289 = vmatpush2.msra.mxu0 0.0
        %1290 = vmatprep.subr.mxu0 0.0
        %1291 = vmatpush2.msra.mxu0 0.0
        %1292 = vmatprep.subr.mxu0 0.0
        %1293 = vmatpush2.msra.mxu0 0.0
        %1294 = vmatprep.subr.mxu0 0.0
        %1295 = vmatpush2.msra.mxu0 0.0
        %1296 = vmatprep.subr.mxu0 0.0
        %1297 = vmatpush2.msra.mxu0 0.0
        %1298 = vmatprep.subr.mxu0 0.0
        %1299 = vmatpush2.msra.mxu0 0.0
        %1300 = vmatprep.mubr.f32.mxu0 0.0
        %1301 = vmatmul.mubr.f32.gmra.mxu0 %v509
        %v1302 = vpop.f32.mrf.mxu0
        %v1303 = vadd.f32 %v1234, %v1302
        %v1304 = vpop.f32.mrf.mxu0
        %1305 = vdwg.mxu0
        %v1306 = vld [vmem:[#allocation11] sm:$0xff]
        %v1307 = vld [vmem:[#allocation11 + $0x8] sm:$0xff]
        %v1308 = vld [vmem:[#allocation11 + $0x10] sm:$0xff]
        %v1309 = vld [vmem:[#allocation11 + $0x18] sm:$0xff]
        %v1310 = vld [vmem:[#allocation11 + $0x20] sm:$0xff]
        %v1311 = vld [vmem:[#allocation11 + $0x28] sm:$0xff]
        %v1312 = vld [vmem:[#allocation11 + $0x30] sm:$0xff]
        %v1313 = vld [vmem:[#allocation11 + $0x38] sm:$0xff]
        %v1314 = vld [vmem:[#allocation11 + $0x40] sm:$0xff]
        %v1315 = vld [vmem:[#allocation11 + $0x48] sm:$0xff]
        %v1316 = vld [vmem:[#allocation11 + $0x50] sm:$0xff]
        %v1317 = vld [vmem:[#allocation11 + $0x58] sm:$0xff]
        %v1318 = vld [vmem:[#allocation11 + $0x60] sm:$0xff]
        %v1319 = vld [vmem:[#allocation11 + $0x68] sm:$0xff]
        %v1320 = vld [vmem:[#allocation11 + $0x70] sm:$0xff]
        %v1321 = vld [vmem:[#allocation11 + $0x78] sm:$0xff]
        %1322 = vmatprep.subr.mxu0 0.0
        %1323 = vmatpush1.msra.mxu0 %v1321
        %1324 = vmatprep.subr.mxu0 0.0
        %1325 = vmatpush1.msra.mxu0 %v1320
        %1326 = vmatprep.subr.mxu0 0.0
        %1327 = vmatpush1.msra.mxu0 %v1319
        %1328 = vmatprep.subr.mxu0 0.0
        %1329 = vmatpush1.msra.mxu0 %v1318
        %1330 = vmatprep.subr.mxu0 0.0
        %1331 = vmatpush1.msra.mxu0 %v1317
        %1332 = vmatprep.subr.mxu0 0.0
        %1333 = vmatpush1.msra.mxu0 %v1316
        %1334 = vmatprep.subr.mxu0 0.0
        %1335 = vmatpush1.msra.mxu0 %v1315
        %1336 = vmatprep.subr.mxu0 0.0
        %1337 = vmatpush1.msra.mxu0 %v1314
        %1338 = vmatprep.subr.mxu0 0.0
        %1339 = vmatpush1.msra.mxu0 %v1313
        %1340 = vmatprep.subr.mxu0 0.0
        %1341 = vmatpush1.msra.mxu0 %v1312
        %1342 = vmatprep.subr.mxu0 0.0
        %1343 = vmatpush1.msra.mxu0 %v1311
        %1344 = vmatprep.subr.mxu0 0.0
        %1345 = vmatpush1.msra.mxu0 %v1310
        %1346 = vmatprep.subr.mxu0 0.0
        %1347 = vmatpush1.msra.mxu0 %v1309
        %1348 = vmatprep.subr.mxu0 0.0
        %1349 = vmatpush1.msra.mxu0 %v1308
        %1350 = vmatprep.subr.mxu0 0.0
        %1351 = vmatpush1.msra.mxu0 %v1307
        %1352 = vmatprep.subr.mxu0 0.0
        %1353 = vmatpush1.msra.mxu0 %v1306
        %1354 = vmatprep.subr.mxu0 0.0
        %1355 = vmatpush2.msra.mxu0 0.0
        %1356 = vmatprep.subr.mxu0 0.0
        %1357 = vmatpush2.msra.mxu0 0.0
        %1358 = vmatprep.subr.mxu0 0.0
        %1359 = vmatpush2.msra.mxu0 0.0
        %1360 = vmatprep.subr.mxu0 0.0
        %1361 = vmatpush2.msra.mxu0 0.0
        %1362 = vmatprep.subr.mxu0 0.0
        %1363 = vmatpush2.msra.mxu0 0.0
        %1364 = vmatprep.subr.mxu0 0.0
        %1365 = vmatpush2.msra.mxu0 0.0
        %1366 = vmatprep.subr.mxu0 0.0
        %1367 = vmatpush2.msra.mxu0 0.0
        %1368 = vmatprep.subr.mxu0 0.0
        %1369 = vmatpush2.msra.mxu0 0.0
        %1370 = vmatprep.subr.mxu0 0.0
        %1371 = vmatpush2.msra.mxu0 0.0
        %1372 = vmatprep.subr.mxu0 0.0
        %1373 = vmatpush2.msra.mxu0 0.0
        %1374 = vmatprep.subr.mxu0 0.0
        %1375 = vmatpush2.msra.mxu0 0.0
        %1376 = vmatprep.subr.mxu0 0.0
        %1377 = vmatpush2.msra.mxu0 0.0
        %1378 = vmatprep.subr.mxu0 0.0
        %1379 = vmatpush2.msra.mxu0 0.0
        %1380 = vmatprep.subr.mxu0 0.0
        %1381 = vmatpush2.msra.mxu0 0.0
        %1382 = vmatprep.subr.mxu0 0.0
        %1383 = vmatpush2.msra.mxu0 0.0
        %1384 = vmatprep.subr.mxu0 0.0
        %1385 = vmatpush2.msra.mxu0 0.0
        %1386 = vmatprep.mubr.f32.mxu0 0.0
        %1387 = vmatmul.mubr.f32.gmra.mxu0 %v845
        %v1388 = vpop.f32.mrf.mxu0
        %v1389 = vadd.f32 0.0, %v1388
        %v1390 = vpop.f32.mrf.mxu0
        %1391 = vmatprep.mubr.f32.mxu0 0.0
        %1392 = vmatmul.mubr.f32.gmra.mxu0 %v850
        %v1393 = vpop.f32.mrf.mxu0
        %v1394 = vadd.f32 0.0, %v1393
        %v1395 = vpop.f32.mrf.mxu0
        %1396 = vmatprep.mubr.f32.mxu0 0.0
        %1397 = vmatmul.mubr.f32.gmra.mxu0 %v855
        %v1398 = vpop.f32.mrf.mxu0
        %v1399 = vadd.f32 0.0, %v1398
        %v1400 = vpop.f32.mrf.mxu0
        %1401 = vmatprep.mubr.f32.mxu0 0.0
        %1402 = vmatmul.mubr.f32.gmra.mxu0 %v860
        %v1403 = vpop.f32.mrf.mxu0
        %v1404 = vadd.f32 0.0, %v1403
        %v1405 = vpop.f32.mrf.mxu0
        %1406 = vmatprep.mubr.f32.mxu0 0.0
        %1407 = vmatmul.mubr.f32.gmra.mxu0 %v865
        %v1408 = vpop.f32.mrf.mxu0
        %v1409 = vadd.f32 0.0, %v1408
        %v1410 = vpop.f32.mrf.mxu0
        %1411 = vmatprep.mubr.f32.mxu0 0.0
        %1412 = vmatmul.mubr.f32.gmra.mxu0 %v870
        %v1413 = vpop.f32.mrf.mxu0
        %v1414 = vadd.f32 0.0, %v1413
        %v1415 = vpop.f32.mrf.mxu0
        %1416 = vmatprep.mubr.f32.mxu0 0.0
        %1417 = vmatmul.mubr.f32.gmra.mxu0 %v875
        %v1418 = vpop.f32.mrf.mxu0
        %v1419 = vadd.f32 0.0, %v1418
        %v1420 = vpop.f32.mrf.mxu0
        %1421 = vmatprep.mubr.f32.mxu0 0.0
        %1422 = vmatmul.mubr.f32.gmra.mxu0 %v880
        %v1423 = vpop.f32.mrf.mxu0
        %v1424 = vadd.f32 0.0, %v1423
        %v1425 = vpop.f32.mrf.mxu0
        %1426 = vmatprep.mubr.f32.mxu0 0.0
        %1427 = vmatmul.mubr.f32.gmra.mxu0 %v885
        %v1428 = vpop.f32.mrf.mxu0
        %v1429 = vadd.f32 0.0, %v1428
        %v1430 = vpop.f32.mrf.mxu0
        %1431 = vmatprep.mubr.f32.mxu0 0.0
        %1432 = vmatmul.mubr.f32.gmra.mxu0 %v890
        %v1433 = vpop.f32.mrf.mxu0
        %v1434 = vadd.f32 0.0, %v1433
        %v1435 = vpop.f32.mrf.mxu0
        %1436 = vmatprep.mubr.f32.mxu0 0.0
        %1437 = vmatmul.mubr.f32.gmra.mxu0 %v895
        %v1438 = vpop.f32.mrf.mxu0
        %v1439 = vadd.f32 0.0, %v1438
        %v1440 = vpop.f32.mrf.mxu0
        %1441 = vmatprep.mubr.f32.mxu0 0.0
        %1442 = vmatmul.mubr.f32.gmra.mxu0 %v900
        %v1443 = vpop.f32.mrf.mxu0
        %v1444 = vadd.f32 0.0, %v1443
        %v1445 = vpop.f32.mrf.mxu0
        %1446 = vmatprep.mubr.f32.mxu0 0.0
        %1447 = vmatmul.mubr.f32.gmra.mxu0 %v905
        %v1448 = vpop.f32.mrf.mxu0
        %v1449 = vadd.f32 0.0, %v1448
        %v1450 = vpop.f32.mrf.mxu0
        %1451 = vmatprep.mubr.f32.mxu0 0.0
        %1452 = vmatmul.mubr.f32.gmra.mxu0 %v910
        %v1453 = vpop.f32.mrf.mxu0
        %v1454 = vadd.f32 0.0, %v1453
        %v1455 = vpop.f32.mrf.mxu0
        %1456 = vmatprep.mubr.f32.mxu0 0.0
        %1457 = vmatmul.mubr.f32.gmra.mxu0 %v915
        %v1458 = vpop.f32.mrf.mxu0
        %v1459 = vadd.f32 0.0, %v1458
        %v1460 = vpop.f32.mrf.mxu0
        %1461 = vmatprep.mubr.f32.mxu0 0.0
        %1462 = vmatmul.mubr.f32.gmra.mxu0 %v920
        %v1463 = vpop.f32.mrf.mxu0
        %v1464 = vadd.f32 0.0, %v1463
        %v1465 = vpop.f32.mrf.mxu0
        %1466 = vmatprep.mubr.f32.mxu0 0.0
        %1467 = vmatmul.mubr.f32.gmra.mxu0 %v925
        %v1468 = vpop.f32.mrf.mxu0
        %v1469 = vadd.f32 0.0, %v1468
        %v1470 = vpop.f32.mrf.mxu0
        %1471 = vmatprep.mubr.f32.mxu0 0.0
        %1472 = vmatmul.mubr.f32.gmra.mxu0 %v930
        %v1473 = vpop.f32.mrf.mxu0
        %v1474 = vadd.f32 0.0, %v1473
        %v1475 = vpop.f32.mrf.mxu0
        %1476 = vmatprep.mubr.f32.mxu0 0.0
        %1477 = vmatmul.mubr.f32.gmra.mxu0 %v935
        %v1478 = vpop.f32.mrf.mxu0
        %v1479 = vadd.f32 0.0, %v1478
        %v1480 = vpop.f32.mrf.mxu0
        %1481 = vmatprep.mubr.f32.mxu0 0.0
        %1482 = vmatmul.mubr.f32.gmra.mxu0 %v940
        %v1483 = vpop.f32.mrf.mxu0
        %v1484 = vadd.f32 0.0, %v1483
        %v1485 = vpop.f32.mrf.mxu0
        %1486 = vmatprep.mubr.f32.mxu0 0.0
        %1487 = vmatmul.mubr.f32.gmra.mxu0 %v945
        %v1488 = vpop.f32.mrf.mxu0
        %v1489 = vadd.f32 0.0, %v1488
        %v1490 = vpop.f32.mrf.mxu0
        %1491 = vmatprep.mubr.f32.mxu0 0.0
        %1492 = vmatmul.mubr.f32.gmra.mxu0 %v950
        %v1493 = vpop.f32.mrf.mxu0
        %v1494 = vadd.f32 0.0, %v1493
        %v1495 = vpop.f32.mrf.mxu0
        %1496 = vmatprep.mubr.f32.mxu0 0.0
        %1497 = vmatmul.mubr.f32.gmra.mxu0 %v955
        %v1498 = vpop.f32.mrf.mxu0
        %v1499 = vadd.f32 0.0, %v1498
        %v1500 = vpop.f32.mrf.mxu0
        %1501 = vmatprep.mubr.f32.mxu0 0.0
        %1502 = vmatmul.mubr.f32.gmra.mxu0 %v960
        %v1503 = vpop.f32.mrf.mxu0
        %v1504 = vadd.f32 0.0, %v1503
        %v1505 = vpop.f32.mrf.mxu0
        %1506 = vmatprep.mubr.f32.mxu0 0.0
        %1507 = vmatmul.mubr.f32.gmra.mxu0 %v965
        %v1508 = vpop.f32.mrf.mxu0
        %v1509 = vadd.f32 0.0, %v1508
        %v1510 = vpop.f32.mrf.mxu0
        %1511 = vmatprep.mubr.f32.mxu0 0.0
        %1512 = vmatmul.mubr.f32.gmra.mxu0 %v970
        %v1513 = vpop.f32.mrf.mxu0
        %v1514 = vadd.f32 0.0, %v1513
        %v1515 = vpop.f32.mrf.mxu0
        %1516 = vmatprep.mubr.f32.mxu0 0.0
        %1517 = vmatmul.mubr.f32.gmra.mxu0 %v975
        %v1518 = vpop.f32.mrf.mxu0
        %v1519 = vadd.f32 0.0, %v1518
        %v1520 = vpop.f32.mrf.mxu0
        %1521 = vmatprep.mubr.f32.mxu0 0.0
        %1522 = vmatmul.mubr.f32.gmra.mxu0 %v980
        %v1523 = vpop.f32.mrf.mxu0
        %v1524 = vadd.f32 0.0, %v1523
        %v1525 = vpop.f32.mrf.mxu0
        %1526 = vmatprep.mubr.f32.mxu0 0.0
        %1527 = vmatmul.mubr.f32.gmra.mxu0 %v985
        %v1528 = vpop.f32.mrf.mxu0
        %v1529 = vadd.f32 0.0, %v1528
        %v1530 = vpop.f32.mrf.mxu0
        %1531 = vmatprep.mubr.f32.mxu0 0.0
        %1532 = vmatmul.mubr.f32.gmra.mxu0 %v990
        %v1533 = vpop.f32.mrf.mxu0
        %v1534 = vadd.f32 0.0, %v1533
        %v1535 = vpop.f32.mrf.mxu0
        %1536 = vmatprep.mubr.f32.mxu0 0.0
        %1537 = vmatmul.mubr.f32.gmra.mxu0 %v995
        %v1538 = vpop.f32.mrf.mxu0
        %v1539 = vadd.f32 0.0, %v1538
        %v1540 = vpop.f32.mrf.mxu0
        %1541 = vmatprep.mubr.f32.mxu0 0.0
        %1542 = vmatmul.mubr.f32.gmra.mxu0 %v1000
        %v1543 = vpop.f32.mrf.mxu0
        %v1544 = vadd.f32 0.0, %v1543
        %v1545 = vpop.f32.mrf.mxu0
        %1546 = vdwg.mxu0
        %v1548 = vcombine.high %v1303, %v1303
        %v1550 = vunpack.c.l.s4 1966171168
        %v1551 = vunpack.c.0.s8 %v1550
        %v1552 = vlaneseq
        %v1553 = vshrl.u32 %v1552, 7
        %v1554 = vsub.s32 %v1551, %v1553
        %v1555 = vrot.slane %v1303, %v1554
        %v1557 = vunpack.c.l.s4 1966171168
        %v1558 = vunpack.c.0.s8 %v1557
        %v1559 = vlaneseq
        %v1560 = vshrl.u32 %v1559, 7
        %v1561 = vsub.s32 %v1558, %v1560
        %v1562 = vrot.slane %v1548, %v1561
        %v1563 = vcombine.high %v1555, %v1555
        %v1564 = vcombine.high %v1562, %v1562
        %v1566 = vunpack.c.l.s4 1966171168
        %v1567 = vunpack.c.0.s8 %v1566
        %v1568 = vlaneseq
        %v1569 = vshrl.u32 %v1568, 7
        %v1570 = vsub.s32 %v1567, %v1569
        %v1571 = vrot.slane %v1555, %v1570
        %v1573 = vunpack.c.l.s4 1966171168
        %v1574 = vunpack.c.0.s8 %v1573
        %v1575 = vlaneseq
        %v1576 = vshrl.u32 %v1575, 7
        %v1577 = vsub.s32 %v1574, %v1576
        %v1578 = vrot.slane %v1562, %v1577
        %v1580 = vunpack.c.l.s4 1966171168
        %v1581 = vunpack.c.0.s8 %v1580
        %v1582 = vlaneseq
        %v1583 = vshrl.u32 %v1582, 7
        %v1584 = vsub.s32 %v1581, %v1583
        %v1585 = vrot.slane %v1563, %v1584
        %v1587 = vunpack.c.l.s4 1966171168
        %v1588 = vunpack.c.0.s8 %v1587
        %v1589 = vlaneseq
        %v1590 = vshrl.u32 %v1589, 7
        %v1591 = vsub.s32 %v1588, %v1590
        %v1592 = vrot.slane %v1564, %v1591
        %v1593 = vcombine.high %v1571, %v1571
        %v1594 = vcombine.high %v1578, %v1578
        %v1595 = vcombine.high %v1585, %v1585
        %v1596 = vcombine.high %v1592, %v1592
        %v1597 = vlaneseq
        %v1598 = vshrl.u32 %v1597, 7
        %v1599 = vsub.s32 0, %v1598
        %v1600 = vrot.slane %v1571, %v1599
        %v1601 = vlaneseq
        %v1602 = vshrl.u32 %v1601, 7
        %v1603 = vsub.s32 0, %v1602
        %v1604 = vrot.slane %v1585, %v1603
        %v1605 = vlaneseq
        %v1606 = vshrl.u32 %v1605, 7
        %v1607 = vsub.s32 0, %v1606
        %v1608 = vrot.slane %v1593, %v1607
        %v1609 = vlaneseq
        %v1610 = vshrl.u32 %v1609, 7
        %v1611 = vsub.s32 0, %v1610
        %v1612 = vrot.slane %v1595, %v1611
        %v1613 = vlaneseq
        %v1614 = vshrl.u32 %v1613, 7
        %v1615 = vsub.s32 0, %v1614
        %v1616 = vrot.slane %v1578, %v1615
        %v1617 = vlaneseq
        %v1618 = vshrl.u32 %v1617, 7
        %v1619 = vsub.s32 0, %v1618
        %v1620 = vrot.slane %v1592, %v1619
        %v1621 = vlaneseq
        %v1622 = vshrl.u32 %v1621, 7
        %v1623 = vsub.s32 0, %v1622
        %v1624 = vrot.slane %v1594, %v1623
        %v1625 = vlaneseq
        %v1626 = vshrl.u32 %v1625, 7
        %v1627 = vsub.s32 0, %v1626
        %v1628 = vrot.slane %v1596, %v1627
        %v1637 = vadd.f32 %v1600, %v1389
        %v1638 = vadd.f32 %v1600, %v1394
        %v1639 = vadd.f32 %v1600, %v1399
        %v1640 = vadd.f32 %v1600, %v1404
        %v1641 = vadd.f32 %v1604, %v1409
        %v1642 = vadd.f32 %v1604, %v1414
        %v1643 = vadd.f32 %v1604, %v1419
        %v1644 = vadd.f32 %v1604, %v1424
        %v1645 = vadd.f32 %v1608, %v1429
        %v1646 = vadd.f32 %v1608, %v1434
        %v1647 = vadd.f32 %v1608, %v1439
        %v1648 = vadd.f32 %v1608, %v1444
        %v1649 = vadd.f32 %v1612, %v1449
        %v1650 = vadd.f32 %v1612, %v1454
        %v1651 = vadd.f32 %v1612, %v1459
        %v1652 = vadd.f32 %v1612, %v1464
        %v1653 = vadd.f32 %v1616, %v1469
        %v1654 = vadd.f32 %v1616, %v1474
        %v1655 = vadd.f32 %v1616, %v1479
        %v1656 = vadd.f32 %v1616, %v1484
        %v1657 = vadd.f32 %v1620, %v1489
        %v1658 = vadd.f32 %v1620, %v1494
        %v1659 = vadd.f32 %v1620, %v1499
        %v1660 = vadd.f32 %v1620, %v1504
        %v1661 = vadd.f32 %v1624, %v1509
        %v1662 = vadd.f32 %v1624, %v1514
        %v1663 = vadd.f32 %v1624, %v1519
        %v1664 = vadd.f32 %v1624, %v1524
        %v1665 = vadd.f32 %v1628, %v1529
        %v1666 = vadd.f32 %v1628, %v1534
        %v1667 = vadd.f32 %v1628, %v1539
        %v1668 = vadd.f32 %v1628, %v1544
        %v1669 = vxor.u32 %v1637, 2147483648
        %v1670 = vxor.u32 %v1638, 2147483648
        %v1671 = vxor.u32 %v1639, 2147483648
        %v1672 = vxor.u32 %v1640, 2147483648
        %v1673 = vxor.u32 %v1641, 2147483648
        %v1674 = vxor.u32 %v1642, 2147483648
        %v1675 = vxor.u32 %v1643, 2147483648
        %v1676 = vxor.u32 %v1644, 2147483648
        %v1677 = vxor.u32 %v1645, 2147483648
        %v1678 = vxor.u32 %v1646, 2147483648
        %v1679 = vxor.u32 %v1647, 2147483648
        %v1680 = vxor.u32 %v1648, 2147483648
        %v1681 = vxor.u32 %v1649, 2147483648
        %v1682 = vxor.u32 %v1650, 2147483648
        %v1683 = vxor.u32 %v1651, 2147483648
        %v1684 = vxor.u32 %v1652, 2147483648
        %v1685 = vxor.u32 %v1653, 2147483648
        %v1686 = vxor.u32 %v1654, 2147483648
        %v1687 = vxor.u32 %v1655, 2147483648
        %v1688 = vxor.u32 %v1656, 2147483648
        %v1689 = vxor.u32 %v1657, 2147483648
        %v1690 = vxor.u32 %v1658, 2147483648
        %v1691 = vxor.u32 %v1659, 2147483648
        %v1692 = vxor.u32 %v1660, 2147483648
        %v1693 = vxor.u32 %v1661, 2147483648
        %v1694 = vxor.u32 %v1662, 2147483648
        %v1695 = vxor.u32 %v1663, 2147483648
        %v1696 = vxor.u32 %v1664, 2147483648
        %v1697 = vxor.u32 %v1665, 2147483648
        %v1698 = vxor.u32 %v1666, 2147483648
        %v1699 = vxor.u32 %v1667, 2147483648
        %v1700 = vxor.u32 %v1668, 2147483648
        %v1701 = vmul.f32 %v1669, 1.442695
        %v1702 = vpow.pop %v1701
        %v1703 = vmul.f32 %v1670, 1.442695
        %v1704 = vpow.pop %v1703
        %v1705 = vmul.f32 %v1671, 1.442695
        %v1706 = vpow.pop %v1705
        %v1707 = vmul.f32 %v1672, 1.442695
        %v1708 = vpow.pop %v1707
        %v1709 = vmul.f32 %v1673, 1.442695
        %v1710 = vpow.pop %v1709
        %v1711 = vmul.f32 %v1674, 1.442695
        %v1712 = vpow.pop %v1711
        %v1713 = vmul.f32 %v1675, 1.442695
        %v1714 = vpow.pop %v1713
        %v1715 = vmul.f32 %v1676, 1.442695
        %v1716 = vpow.pop %v1715
        %v1717 = vmul.f32 %v1677, 1.442695
        %v1718 = vpow.pop %v1717
        %v1719 = vmul.f32 %v1678, 1.442695
        %v1720 = vpow.pop %v1719
        %v1721 = vmul.f32 %v1679, 1.442695
        %v1722 = vpow.pop %v1721
        %v1723 = vmul.f32 %v1680, 1.442695
        %v1724 = vpow.pop %v1723
        %v1725 = vmul.f32 %v1681, 1.442695
        %v1726 = vpow.pop %v1725
        %v1727 = vmul.f32 %v1682, 1.442695
        %v1728 = vpow.pop %v1727
        %v1729 = vmul.f32 %v1683, 1.442695
        %v1730 = vpow.pop %v1729
        %v1731 = vmul.f32 %v1684, 1.442695
        %v1732 = vpow.pop %v1731
        %v1733 = vmul.f32 %v1685, 1.442695
        %v1734 = vpow.pop %v1733
        %v1735 = vmul.f32 %v1686, 1.442695
        %v1736 = vpow.pop %v1735
        %v1737 = vmul.f32 %v1687, 1.442695
        %v1738 = vpow.pop %v1737
        %v1739 = vmul.f32 %v1688, 1.442695
        %v1740 = vpow.pop %v1739
        %v1741 = vmul.f32 %v1689, 1.442695
        %v1742 = vpow.pop %v1741
        %v1743 = vmul.f32 %v1690, 1.442695
        %v1744 = vpow.pop %v1743
        %v1745 = vmul.f32 %v1691, 1.442695
        %v1746 = vpow.pop %v1745
        %v1747 = vmul.f32 %v1692, 1.442695
        %v1748 = vpow.pop %v1747
        %v1749 = vmul.f32 %v1693, 1.442695
        %v1750 = vpow.pop %v1749
        %v1751 = vmul.f32 %v1694, 1.442695
        %v1752 = vpow.pop %v1751
        %v1753 = vmul.f32 %v1695, 1.442695
        %v1754 = vpow.pop %v1753
        %v1755 = vmul.f32 %v1696, 1.442695
        %v1756 = vpow.pop %v1755
        %v1757 = vmul.f32 %v1697, 1.442695
        %v1758 = vpow.pop %v1757
        %v1759 = vmul.f32 %v1698, 1.442695
        %v1760 = vpow.pop %v1759
        %v1761 = vmul.f32 %v1699, 1.442695
        %v1762 = vpow.pop %v1761
        %v1763 = vmul.f32 %v1700, 1.442695
        %v1764 = vpow.pop %v1763
        %v1765 = vadd.f32 %v1702, 1.0
        %v1766 = vadd.f32 %v1704, 1.0
        %v1767 = vadd.f32 %v1706, 1.0
        %v1768 = vadd.f32 %v1708, 1.0
        %v1769 = vadd.f32 %v1710, 1.0
        %v1770 = vadd.f32 %v1712, 1.0
        %v1771 = vadd.f32 %v1714, 1.0
        %v1772 = vadd.f32 %v1716, 1.0
        %v1773 = vadd.f32 %v1718, 1.0
        %v1774 = vadd.f32 %v1720, 1.0
        %v1775 = vadd.f32 %v1722, 1.0
        %v1776 = vadd.f32 %v1724, 1.0
        %v1777 = vadd.f32 %v1726, 1.0
        %v1778 = vadd.f32 %v1728, 1.0
        %v1779 = vadd.f32 %v1730, 1.0
        %v1780 = vadd.f32 %v1732, 1.0
        %v1781 = vadd.f32 %v1734, 1.0
        %v1782 = vadd.f32 %v1736, 1.0
        %v1783 = vadd.f32 %v1738, 1.0
        %v1784 = vadd.f32 %v1740, 1.0
        %v1785 = vadd.f32 %v1742, 1.0
        %v1786 = vadd.f32 %v1744, 1.0
        %v1787 = vadd.f32 %v1746, 1.0
        %v1788 = vadd.f32 %v1748, 1.0
        %v1789 = vadd.f32 %v1750, 1.0
        %v1790 = vadd.f32 %v1752, 1.0
        %v1791 = vadd.f32 %v1754, 1.0
        %v1792 = vadd.f32 %v1756, 1.0
        %v1793 = vadd.f32 %v1758, 1.0
        %v1794 = vadd.f32 %v1760, 1.0
        %v1795 = vadd.f32 %v1762, 1.0
        %v1796 = vadd.f32 %v1764, 1.0
        %v1797 = vrcp.pop %v1765
        %v1798 = vmul.f32 1.0, %v1797
        %v1799 = vrcp.pop %v1766
        %v1800 = vmul.f32 1.0, %v1799
        %v1801 = vrcp.pop %v1767
        %v1802 = vmul.f32 1.0, %v1801
        %v1803 = vrcp.pop %v1768
        %v1804 = vmul.f32 1.0, %v1803
        %v1805 = vrcp.pop %v1769
        %v1806 = vmul.f32 1.0, %v1805
        %v1807 = vrcp.pop %v1770
        %v1808 = vmul.f32 1.0, %v1807
        %v1809 = vrcp.pop %v1771
        %v1810 = vmul.f32 1.0, %v1809
        %v1811 = vrcp.pop %v1772
        %v1812 = vmul.f32 1.0, %v1811
        %v1813 = vrcp.pop %v1773
        %v1814 = vmul.f32 1.0, %v1813
        %v1815 = vrcp.pop %v1774
        %v1816 = vmul.f32 1.0, %v1815
        %v1817 = vrcp.pop %v1775
        %v1818 = vmul.f32 1.0, %v1817
        %v1819 = vrcp.pop %v1776
        %v1820 = vmul.f32 1.0, %v1819
        %v1821 = vrcp.pop %v1777
        %v1822 = vmul.f32 1.0, %v1821
        %v1823 = vrcp.pop %v1778
        %v1824 = vmul.f32 1.0, %v1823
        %v1825 = vrcp.pop %v1779
        %v1826 = vmul.f32 1.0, %v1825
        %v1827 = vrcp.pop %v1780
        %v1828 = vmul.f32 1.0, %v1827
        %v1829 = vrcp.pop %v1781
        %v1830 = vmul.f32 1.0, %v1829
        %v1831 = vrcp.pop %v1782
        %v1832 = vmul.f32 1.0, %v1831
        %v1833 = vrcp.pop %v1783
        %v1834 = vmul.f32 1.0, %v1833
        %v1835 = vrcp.pop %v1784
        %v1836 = vmul.f32 1.0, %v1835
        %v1837 = vrcp.pop %v1785
        %v1838 = vmul.f32 1.0, %v1837
        %v1839 = vrcp.pop %v1786
        %v1840 = vmul.f32 1.0, %v1839
        %v1841 = vrcp.pop %v1787
        %v1842 = vmul.f32 1.0, %v1841
        %v1843 = vrcp.pop %v1788
        %v1844 = vmul.f32 1.0, %v1843
        %v1845 = vrcp.pop %v1789
        %v1846 = vmul.f32 1.0, %v1845
        %v1847 = vrcp.pop %v1790
        %v1848 = vmul.f32 1.0, %v1847
        %v1849 = vrcp.pop %v1791
        %v1850 = vmul.f32 1.0, %v1849
        %v1851 = vrcp.pop %v1792
        %v1852 = vmul.f32 1.0, %v1851
        %v1853 = vrcp.pop %v1793
        %v1854 = vmul.f32 1.0, %v1853
        %v1855 = vrcp.pop %v1794
        %v1856 = vmul.f32 1.0, %v1855
        %v1857 = vrcp.pop %v1795
        %v1858 = vmul.f32 1.0, %v1857
        %v1859 = vrcp.pop %v1796
        %v1860 = vmul.f32 1.0, %v1859
        %v1861 = vmul.f32 %v1798, %v845
        %v1862 = vmul.f32 %v1800, %v850
        %v1863 = vmul.f32 %v1802, %v855
        %v1864 = vmul.f32 %v1804, %v860
        %v1865 = vmul.f32 %v1806, %v865
        %v1866 = vmul.f32 %v1808, %v870
        %v1867 = vmul.f32 %v1810, %v875
        %v1868 = vmul.f32 %v1812, %v880
        %v1869 = vmul.f32 %v1814, %v885
        %v1870 = vmul.f32 %v1816, %v890
        %v1871 = vmul.f32 %v1818, %v895
        %v1872 = vmul.f32 %v1820, %v900
        %v1873 = vmul.f32 %v1822, %v905
        %v1874 = vmul.f32 %v1824, %v910
        %v1875 = vmul.f32 %v1826, %v915
        %v1876 = vmul.f32 %v1828, %v920
        %v1877 = vmul.f32 %v1830, %v925
        %v1878 = vmul.f32 %v1832, %v930
        %v1879 = vmul.f32 %v1834, %v935
        %v1880 = vmul.f32 %v1836, %v940
        %v1881 = vmul.f32 %v1838, %v945
        %v1882 = vmul.f32 %v1840, %v950
        %v1883 = vmul.f32 %v1842, %v955
        %v1884 = vmul.f32 %v1844, %v960
        %v1885 = vmul.f32 %v1846, %v965
        %v1886 = vmul.f32 %v1848, %v970
        %v1887 = vmul.f32 %v1850, %v975
        %v1888 = vmul.f32 %v1852, %v980
        %v1889 = vmul.f32 %v1854, %v985
        %v1890 = vmul.f32 %v1856, %v990
        %v1891 = vmul.f32 %v1858, %v995
        %v1892 = vmul.f32 %v1860, %v1000
        %v1893 = vadd.f32 %v1861, %v1862
        %v1894 = vadd.f32 %v1893, %v1863
        %v1895 = vadd.f32 %v1894, %v1864
        %v1896 = vrot.slane %v1895, 4
        %v1897 = vadd.f32 %v1895, %v1896
        %v1898 = vrot.slane %v1897, 2
        %v1899 = vadd.f32 %v1897, %v1898
        %v1900 = vrot.slane %v1899, 1
        %v1901 = vadd.f32 %v1899, %v1900
        %v1902 = vadd.f32 %v1865, %v1866
        %v1903 = vadd.f32 %v1902, %v1867
        %v1904 = vadd.f32 %v1903, %v1868
        %v1905 = vrot.slane %v1904, 4
        %v1906 = vadd.f32 %v1904, %v1905
        %v1907 = vrot.slane %v1906, 2
        %v1908 = vadd.f32 %v1906, %v1907
        %v1909 = vrot.slane %v1908, 1
        %v1910 = vadd.f32 %v1908, %v1909
        %v1911 = vadd.f32 %v1869, %v1870
        %v1912 = vadd.f32 %v1911, %v1871
        %v1913 = vadd.f32 %v1912, %v1872
        %v1914 = vrot.slane %v1913, 4
        %v1915 = vadd.f32 %v1913, %v1914
        %v1916 = vrot.slane %v1915, 2
        %v1917 = vadd.f32 %v1915, %v1916
        %v1918 = vrot.slane %v1917, 1
        %v1919 = vadd.f32 %v1917, %v1918
        %v1920 = vadd.f32 %v1873, %v1874
        %v1921 = vadd.f32 %v1920, %v1875
        %v1922 = vadd.f32 %v1921, %v1876
        %v1923 = vrot.slane %v1922, 4
        %v1924 = vadd.f32 %v1922, %v1923
        %v1925 = vrot.slane %v1924, 2
        %v1926 = vadd.f32 %v1924, %v1925
        %v1927 = vrot.slane %v1926, 1
        %v1928 = vadd.f32 %v1926, %v1927
        %v1929 = vadd.f32 %v1877, %v1878
        %v1930 = vadd.f32 %v1929, %v1879
        %v1931 = vadd.f32 %v1930, %v1880
        %v1932 = vrot.slane %v1931, 4
        %v1933 = vadd.f32 %v1931, %v1932
        %v1934 = vrot.slane %v1933, 2
        %v1935 = vadd.f32 %v1933, %v1934
        %v1936 = vrot.slane %v1935, 1
        %v1937 = vadd.f32 %v1935, %v1936
        %v1938 = vadd.f32 %v1881, %v1882
        %v1939 = vadd.f32 %v1938, %v1883
        %v1940 = vadd.f32 %v1939, %v1884
        %v1941 = vrot.slane %v1940, 4
        %v1942 = vadd.f32 %v1940, %v1941
        %v1943 = vrot.slane %v1942, 2
        %v1944 = vadd.f32 %v1942, %v1943
        %v1945 = vrot.slane %v1944, 1
        %v1946 = vadd.f32 %v1944, %v1945
        %v1947 = vadd.f32 %v1885, %v1886
        %v1948 = vadd.f32 %v1947, %v1887
        %v1949 = vadd.f32 %v1948, %v1888
        %v1950 = vrot.slane %v1949, 4
        %v1951 = vadd.f32 %v1949, %v1950
        %v1952 = vrot.slane %v1951, 2
        %v1953 = vadd.f32 %v1951, %v1952
        %v1954 = vrot.slane %v1953, 1
        %v1955 = vadd.f32 %v1953, %v1954
        %v1956 = vadd.f32 %v1889, %v1890
        %v1957 = vadd.f32 %v1956, %v1891
        %v1958 = vadd.f32 %v1957, %v1892
        %v1959 = vrot.slane %v1958, 4
        %v1960 = vadd.f32 %v1958, %v1959
        %v1961 = vrot.slane %v1960, 2
        %v1962 = vadd.f32 %v1960, %v1961
        %v1963 = vrot.slane %v1962, 1
        %v1964 = vadd.f32 %v1962, %v1963
        %v1973 = vsel %vm1083, %v1910, %v1901
        %v1974 = vsel %vm1085, %v1919, %v1973
        %v1975 = vsel %vm1087, %v1928, %v1974
        %v1976 = vsel %vm1089, %v1937, %v1975
        %v1977 = vsel %vm1091, %v1946, %v1976
        %v1978 = vsel %vm1093, %v1955, %v1977
        %v1979 = vsel %vm1095, %v1964, %v1978
        %v1981 = vld [vmem:[#allocation13] sm:$0xff]
        %v1982 = vld [vmem:[#allocation13 + $0x8] sm:$0xff]
        %v1983 = vld [vmem:[#allocation13 + $0x10] sm:$0xff]
        %v1984 = vld [vmem:[#allocation13 + $0x18] sm:$0xff]
        %v1985 = vld [vmem:[#allocation13 + $0x20] sm:$0xff]
        %v1986 = vld [vmem:[#allocation13 + $0x28] sm:$0xff]
        %v1987 = vld [vmem:[#allocation13 + $0x30] sm:$0xff]
        %v1988 = vld [vmem:[#allocation13 + $0x38] sm:$0xff]
        %v1989 = vld [vmem:[#allocation13 + $0x40] sm:$0xff]
        %v1990 = vld [vmem:[#allocation13 + $0x48] sm:$0xff]
        %v1991 = vld [vmem:[#allocation13 + $0x50] sm:$0xff]
        %v1992 = vld [vmem:[#allocation13 + $0x58] sm:$0xff]
        %v1993 = vld [vmem:[#allocation13 + $0x60] sm:$0xff]
        %v1994 = vld [vmem:[#allocation13 + $0x68] sm:$0xff]
        %v1995 = vld [vmem:[#allocation13 + $0x70] sm:$0xff]
        %v1996 = vld [vmem:[#allocation13 + $0x78] sm:$0xff]
        %v1997 = vld [vmem:[#allocation13 + $0x80] sm:$0xff]
        %v1998 = vld [vmem:[#allocation13 + $0x88] sm:$0xff]
        %v1999 = vld [vmem:[#allocation13 + $0x90] sm:$0xff]
        %v2000 = vld [vmem:[#allocation13 + $0x98] sm:$0xff]
        %v2001 = vld [vmem:[#allocation13 + $0xa0] sm:$0xff]
        %v2002 = vld [vmem:[#allocation13 + $0xa8] sm:$0xff]
        %v2003 = vld [vmem:[#allocation13 + $0xb0] sm:$0xff]
        %v2004 = vld [vmem:[#allocation13 + $0xb8] sm:$0xff]
        %v2005 = vld [vmem:[#allocation13 + $0xc0] sm:$0xff]
        %v2006 = vld [vmem:[#allocation13 + $0xc8] sm:$0xff]
        %v2007 = vld [vmem:[#allocation13 + $0xd0] sm:$0xff]
        %v2008 = vld [vmem:[#allocation13 + $0xd8] sm:$0xff]
        %v2009 = vld [vmem:[#allocation13 + $0xe0] sm:$0xff]
        %v2010 = vld [vmem:[#allocation13 + $0xe8] sm:$0xff]
        %v2011 = vld [vmem:[#allocation13 + $0xf0] sm:$0xff]
        %v2012 = vld [vmem:[#allocation13 + $0xf8] sm:$0xff]
        %v2013 = vld [vmem:[%s9] sm:$0x1]
        %v2015 = vlaneseq
        %v2016 = vshrl.u32 %v2015, 7
        %v2017 = vsub.s32 0, %v2016
        %v2018 = vrot.slane %v2013, %v2017
        %2020 = vmatprep.subr.mxu0 0.0
        %2021 = vmatpush1.msra.mxu0 %v1996
        %2022 = vmatprep.subr.mxu0 0.0
        %2023 = vmatpush1.msra.mxu0 %v1995
        %2024 = vmatprep.subr.mxu0 0.0
        %2025 = vmatpush1.msra.mxu0 %v1994
        %2026 = vmatprep.subr.mxu0 0.0
        %2027 = vmatpush1.msra.mxu0 %v1993
        %2028 = vmatprep.subr.mxu0 0.0
        %2029 = vmatpush1.msra.mxu0 %v1992
        %2030 = vmatprep.subr.mxu0 0.0
        %2031 = vmatpush1.msra.mxu0 %v1991
        %2032 = vmatprep.subr.mxu0 0.0
        %2033 = vmatpush1.msra.mxu0 %v1990
        %2034 = vmatprep.subr.mxu0 0.0
        %2035 = vmatpush1.msra.mxu0 %v1989
        %2036 = vmatprep.subr.mxu0 0.0
        %2037 = vmatpush1.msra.mxu0 %v1988
        %2038 = vmatprep.subr.mxu0 0.0
        %2039 = vmatpush1.msra.mxu0 %v1987
        %2040 = vmatprep.subr.mxu0 0.0
        %2041 = vmatpush1.msra.mxu0 %v1986
        %2042 = vmatprep.subr.mxu0 0.0
        %2043 = vmatpush1.msra.mxu0 %v1985
        %2044 = vmatprep.subr.mxu0 0.0
        %2045 = vmatpush1.msra.mxu0 %v1984
        %2046 = vmatprep.subr.mxu0 0.0
        %2047 = vmatpush1.msra.mxu0 %v1983
        %2048 = vmatprep.subr.mxu0 0.0
        %2049 = vmatpush1.msra.mxu0 %v1982
        %2050 = vmatprep.subr.mxu0 0.0
        %2051 = vmatpush1.msra.mxu0 %v1981
        %2052 = vmatprep.subr.mxu0 0.0
        %2053 = vmatpush2.msra.mxu0 %v2012
        %2054 = vmatprep.subr.mxu0 0.0
        %2055 = vmatpush2.msra.mxu0 %v2011
        %2056 = vmatprep.subr.mxu0 0.0
        %2057 = vmatpush2.msra.mxu0 %v2010
        %2058 = vmatprep.subr.mxu0 0.0
        %2059 = vmatpush2.msra.mxu0 %v2009
        %2060 = vmatprep.subr.mxu0 0.0
        %2061 = vmatpush2.msra.mxu0 %v2008
        %2062 = vmatprep.subr.mxu0 0.0
        %2063 = vmatpush2.msra.mxu0 %v2007
        %2064 = vmatprep.subr.mxu0 0.0
        %2065 = vmatpush2.msra.mxu0 %v2006
        %2066 = vmatprep.subr.mxu0 0.0
        %2067 = vmatpush2.msra.mxu0 %v2005
        %2068 = vmatprep.subr.mxu0 0.0
        %2069 = vmatpush2.msra.mxu0 %v2004
        %2070 = vmatprep.subr.mxu0 0.0
        %2071 = vmatpush2.msra.mxu0 %v2003
        %2072 = vmatprep.subr.mxu0 0.0
        %2073 = vmatpush2.msra.mxu0 %v2002
        %2074 = vmatprep.subr.mxu0 0.0
        %2075 = vmatpush2.msra.mxu0 %v2001
        %2076 = vmatprep.subr.mxu0 0.0
        %2077 = vmatpush2.msra.mxu0 %v2000
        %2078 = vmatprep.subr.mxu0 0.0
        %2079 = vmatpush2.msra.mxu0 %v1999
        %2080 = vmatprep.subr.mxu0 0.0
        %2081 = vmatpush2.msra.mxu0 %v1998
        %2082 = vmatprep.subr.mxu0 0.0
        %2083 = vmatpush2.msra.mxu0 %v1997
        %2084 = vmatprep.mubr.f32.mxu0 %v1979
        %2085 = vmatmul.mubr.f32.gmra.mxu0 %v509
        %v2086 = vpop.f32.mrf.mxu0
        %v2087 = vadd.f32 %v2018, %v2086
        %v2088 = vpop.f32.mrf.mxu0
        %2089 = vdwg.mxu0
        %v2090 = vtanh.pop %v2087
        %v2091 = vsub.f32 1.0, %v1212
        %v2092 = vmul.f32 %v2091, %v1096
        %v2093 = vmul.f32 %v1212, %v2090
        %v2094 = vadd.f32 %v2092, %v2093
        %v2095 = vlaneseq
        %v2096 = vshrl.u32 %v2095, 7
        %v2097 = vadd.s32 %v2096, 8
        %v2098 = vadd.s32 %v2096, 16
        %v2099 = vadd.s32 %v2096, 24
        %v2100 = vadd.s32 %v2096, 32
        %v2101 = vadd.s32 %v2096, 40
        %v2102 = vadd.s32 %v2096, 48
        %v2103 = vadd.s32 %v2096, 56
        %v2104 = vadd.s32 %v2096, 64
        %v2105 = vadd.s32 %v2096, 72
        %v2106 = vadd.s32 %v2096, 80
        %v2107 = vadd.s32 %v2096, 88
        %v2108 = vadd.s32 %v2096, 96
        %v2109 = vadd.s32 %v2096, 104
        %v2110 = vadd.s32 %v2096, 112
        %v2111 = vadd.s32 %v2096, 120
        %v2112 = vlaneseq
        %v2113 = vshrl.u32 %v2112, 7
        %v2114 = vsub.s32 0, %v2113
        %v2115 = vrot.slane %v511, %v2114
        %vm2116 = vcmp.eq.s32.totalorder %v2096, %v2115
        %vm2117 = vcmp.eq.s32.totalorder %v2097, %v2115
        %vm2118 = vcmp.eq.s32.totalorder %v2098, %v2115
        %vm2119 = vcmp.eq.s32.totalorder %v2099, %v2115
        %vm2120 = vcmp.eq.s32.totalorder %v2100, %v2115
        %vm2121 = vcmp.eq.s32.totalorder %v2101, %v2115
        %vm2122 = vcmp.eq.s32.totalorder %v2102, %v2115
        %vm2123 = vcmp.eq.s32.totalorder %v2103, %v2115
        %vm2124 = vcmp.eq.s32.totalorder %v2104, %v2115
        %vm2125 = vcmp.eq.s32.totalorder %v2105, %v2115
        %vm2126 = vcmp.eq.s32.totalorder %v2106, %v2115
        %vm2127 = vcmp.eq.s32.totalorder %v2107, %v2115
        %vm2128 = vcmp.eq.s32.totalorder %v2108, %v2115
        %vm2129 = vcmp.eq.s32.totalorder %v2109, %v2115
        %vm2130 = vcmp.eq.s32.totalorder %v2110, %v2115
        %vm2131 = vcmp.eq.s32.totalorder %v2111, %v2115
        %v2132 = vsel %vm2116, 1, 0
        %v2133 = vsel %vm2117, 1, 0
        %v2134 = vsel %vm2118, 1, 0
        %v2135 = vsel %vm2119, 1, 0
        %v2136 = vsel %vm2120, 1, 0
        %v2137 = vsel %vm2121, 1, 0
        %v2138 = vsel %vm2122, 1, 0
        %v2139 = vsel %vm2123, 1, 0
        %v2140 = vsel %vm2124, 1, 0
        %v2141 = vsel %vm2125, 1, 0
        %v2142 = vsel %vm2126, 1, 0
        %v2143 = vsel %vm2127, 1, 0
        %v2144 = vsel %vm2128, 1, 0
        %v2145 = vsel %vm2129, 1, 0
        %v2146 = vsel %vm2130, 1, 0
        %v2147 = vsel %vm2131, 1, 0
        %v2148 = vcvt.s32.f32 %v2132
        %v2149 = vcvt.s32.f32 %v2133
        %v2150 = vcvt.s32.f32 %v2134
        %v2151 = vcvt.s32.f32 %v2135
        %v2152 = vcvt.s32.f32 %v2136
        %v2153 = vcvt.s32.f32 %v2137
        %v2154 = vcvt.s32.f32 %v2138
        %v2155 = vcvt.s32.f32 %v2139
        %v2156 = vcvt.s32.f32 %v2140
        %v2157 = vcvt.s32.f32 %v2141
        %v2158 = vcvt.s32.f32 %v2142
        %v2159 = vcvt.s32.f32 %v2143
        %v2160 = vcvt.s32.f32 %v2144
        %v2161 = vcvt.s32.f32 %v2145
        %v2162 = vcvt.s32.f32 %v2146
        %v2163 = vcvt.s32.f32 %v2147
        %vm2164 = vcmask 64512
        %v2166 = vsel %vm2164, %v2148, 0
        %v2169 = vsel %vm2164, %v2149, 0
        %v2172 = vsel %vm2164, %v2150, 0
        %v2175 = vsel %vm2164, %v2151, 0
        %v2178 = vsel %vm2164, %v2152, 0
        %v2181 = vsel %vm2164, %v2153, 0
        %v2184 = vsel %vm2164, %v2154, 0
        %v2187 = vsel %vm2164, %v2155, 0
        %v2190 = vsel %vm2164, %v2156, 0
        %v2193 = vsel %vm2164, %v2157, 0
        %v2196 = vsel %vm2164, %v2158, 0
        %v2199 = vsel %vm2164, %v2159, 0
        %v2202 = vsel %vm2164, %v2160, 0
        %v2205 = vsel %vm2164, %v2161, 0
        %v2208 = vsel %vm2164, %v2162, 0
        %v2211 = vsel %vm2164, %v2163, 0
        %2213 = vmatprep.subr.mxu0 0.0
        %2214 = vmatpush1.msra.mxu0 0.0
        %2215 = vmatprep.subr.mxu0 0.0
        %2216 = vmatpush1.msra.mxu0 0.0
        %2217 = vmatprep.subr.mxu0 0.0
        %2218 = vmatpush1.msra.mxu0 0.0
        %2219 = vmatprep.subr.mxu0 0.0
        %2220 = vmatpush1.msra.mxu0 0.0
        %2221 = vmatprep.subr.mxu0 0.0
        %2222 = vmatpush1.msra.mxu0 0.0
        %2223 = vmatprep.subr.mxu0 0.0
        %2224 = vmatpush1.msra.mxu0 0.0
        %2225 = vmatprep.subr.mxu0 0.0
        %2226 = vmatpush1.msra.mxu0 0.0
        %2227 = vmatprep.subr.mxu0 0.0
        %2228 = vmatpush1.msra.mxu0 0.0
        %2229 = vmatprep.subr.mxu0 0.0
        %2230 = vmatpush1.msra.mxu0 0.0
        %2231 = vmatprep.subr.mxu0 0.0
        %2232 = vmatpush1.msra.mxu0 0.0
        %2233 = vmatprep.subr.mxu0 0.0
        %2234 = vmatpush1.msra.mxu0 0.0
        %2235 = vmatprep.subr.mxu0 0.0
        %2236 = vmatpush1.msra.mxu0 0.0
        %2237 = vmatprep.subr.mxu0 0.0
        %2238 = vmatpush1.msra.mxu0 0.0
        %2239 = vmatprep.subr.mxu0 0.0
        %2240 = vmatpush1.msra.mxu0 0.0
        %2241 = vmatprep.subr.mxu0 0.0
        %2242 = vmatpush1.msra.mxu0 0.0
        %2243 = vmatprep.subr.mxu0 0.0
        %2244 = vmatpush1.msra.mxu0 %v2094
        %2245 = vmatprep.subr.mxu0 0.0
        %2246 = vmatpush2.msra.mxu0 0.0
        %2247 = vmatprep.subr.mxu0 0.0
        %2248 = vmatpush2.msra.mxu0 0.0
        %2249 = vmatprep.subr.mxu0 0.0
        %2250 = vmatpush2.msra.mxu0 0.0
        %2251 = vmatprep.subr.mxu0 0.0
        %2252 = vmatpush2.msra.mxu0 0.0
        %2253 = vmatprep.subr.mxu0 0.0
        %2254 = vmatpush2.msra.mxu0 0.0
        %2255 = vmatprep.subr.mxu0 0.0
        %2256 = vmatpush2.msra.mxu0 0.0
        %2257 = vmatprep.subr.mxu0 0.0
        %2258 = vmatpush2.msra.mxu0 0.0
        %2259 = vmatprep.subr.mxu0 0.0
        %2260 = vmatpush2.msra.mxu0 0.0
        %2261 = vmatprep.subr.mxu0 0.0
        %2262 = vmatpush2.msra.mxu0 0.0
        %2263 = vmatprep.subr.mxu0 0.0
        %2264 = vmatpush2.msra.mxu0 0.0
        %2265 = vmatprep.subr.mxu0 0.0
        %2266 = vmatpush2.msra.mxu0 0.0
        %2267 = vmatprep.subr.mxu0 0.0
        %2268 = vmatpush2.msra.mxu0 0.0
        %2269 = vmatprep.subr.mxu0 0.0
        %2270 = vmatpush2.msra.mxu0 0.0
        %2271 = vmatprep.subr.mxu0 0.0
        %2272 = vmatpush2.msra.mxu0 0.0
        %2273 = vmatprep.subr.mxu0 0.0
        %2274 = vmatpush2.msra.mxu0 0.0
        %2275 = vmatprep.subr.mxu0 0.0
        %2276 = vmatpush2.msra.mxu0 0.0
        %2277 = vmatprep.mubr.f32.mxu0 0.0
        %2278 = vmatmul.mubr.f32.gmra.mxu0 %v2166
        %v2279 = vpop.f32.mrf.mxu0
        %v2280 = vadd.f32 0.0, %v2279
        %v2281 = vpop.f32.mrf.mxu0
        %2282 = vmatprep.mubr.f32.mxu0 0.0
        %2283 = vmatmul.mubr.f32.gmra.mxu0 %v2169
        %v2284 = vpop.f32.mrf.mxu0
        %v2285 = vadd.f32 0.0, %v2284
        %v2286 = vpop.f32.mrf.mxu0
        %2287 = vmatprep.mubr.f32.mxu0 0.0
        %2288 = vmatmul.mubr.f32.gmra.mxu0 %v2172
        %v2289 = vpop.f32.mrf.mxu0
        %v2290 = vadd.f32 0.0, %v2289
        %v2291 = vpop.f32.mrf.mxu0
        %2292 = vmatprep.mubr.f32.mxu0 0.0
        %2293 = vmatmul.mubr.f32.gmra.mxu0 %v2175
        %v2294 = vpop.f32.mrf.mxu0
        %v2295 = vadd.f32 0.0, %v2294
        %v2296 = vpop.f32.mrf.mxu0
        %2297 = vmatprep.mubr.f32.mxu0 0.0
        %2298 = vmatmul.mubr.f32.gmra.mxu0 %v2178
        %v2299 = vpop.f32.mrf.mxu0
        %v2300 = vadd.f32 0.0, %v2299
        %v2301 = vpop.f32.mrf.mxu0
        %2302 = vmatprep.mubr.f32.mxu0 0.0
        %2303 = vmatmul.mubr.f32.gmra.mxu0 %v2181
        %v2304 = vpop.f32.mrf.mxu0
        %v2305 = vadd.f32 0.0, %v2304
        %v2306 = vpop.f32.mrf.mxu0
        %2307 = vmatprep.mubr.f32.mxu0 0.0
        %2308 = vmatmul.mubr.f32.gmra.mxu0 %v2184
        %v2309 = vpop.f32.mrf.mxu0
        %v2310 = vadd.f32 0.0, %v2309
        %v2311 = vpop.f32.mrf.mxu0
        %2312 = vmatprep.mubr.f32.mxu0 0.0
        %2313 = vmatmul.mubr.f32.gmra.mxu0 %v2187
        %v2314 = vpop.f32.mrf.mxu0
        %v2315 = vadd.f32 0.0, %v2314
        %v2316 = vpop.f32.mrf.mxu0
        %2317 = vmatprep.mubr.f32.mxu0 0.0
        %2318 = vmatmul.mubr.f32.gmra.mxu0 %v2190
        %v2319 = vpop.f32.mrf.mxu0
        %v2320 = vadd.f32 0.0, %v2319
        %v2321 = vpop.f32.mrf.mxu0
        %2322 = vmatprep.mubr.f32.mxu0 0.0
        %2323 = vmatmul.mubr.f32.gmra.mxu0 %v2193
        %v2324 = vpop.f32.mrf.mxu0
        %v2325 = vadd.f32 0.0, %v2324
        %v2326 = vpop.f32.mrf.mxu0
        %2327 = vmatprep.mubr.f32.mxu0 0.0
        %2328 = vmatmul.mubr.f32.gmra.mxu0 %v2196
        %v2329 = vpop.f32.mrf.mxu0
        %v2330 = vadd.f32 0.0, %v2329
        %v2331 = vpop.f32.mrf.mxu0
        %2332 = vmatprep.mubr.f32.mxu0 0.0
        %2333 = vmatmul.mubr.f32.gmra.mxu0 %v2199
        %v2334 = vpop.f32.mrf.mxu0
        %v2335 = vadd.f32 0.0, %v2334
        %v2336 = vpop.f32.mrf.mxu0
        %2337 = vmatprep.mubr.f32.mxu0 0.0
        %2338 = vmatmul.mubr.f32.gmra.mxu0 %v2202
        %v2339 = vpop.f32.mrf.mxu0
        %v2340 = vadd.f32 0.0, %v2339
        %v2341 = vpop.f32.mrf.mxu0
        %2342 = vmatprep.mubr.f32.mxu0 0.0
        %2343 = vmatmul.mubr.f32.gmra.mxu0 %v2205
        %v2344 = vpop.f32.mrf.mxu0
        %v2345 = vadd.f32 0.0, %v2344
        %v2346 = vpop.f32.mrf.mxu0
        %2347 = vmatprep.mubr.f32.mxu0 0.0
        %2348 = vmatmul.mubr.f32.gmra.mxu0 %v2208
        %v2349 = vpop.f32.mrf.mxu0
        %v2350 = vadd.f32 0.0, %v2349
        %v2351 = vpop.f32.mrf.mxu0
        %2352 = vmatprep.mubr.f32.mxu0 0.0
        %2353 = vmatmul.mubr.f32.gmra.mxu0 %v2211
        %v2354 = vpop.f32.mrf.mxu0
        %v2355 = vadd.f32 0.0, %v2354
        %v2356 = vpop.f32.mrf.mxu0
        %2357 = vdwg.mxu0
        %v2358 = vadd.f32 %v512, %v2280
        %v2359 = vadd.f32 %v513, %v2285
        %v2360 = vadd.f32 %v514, %v2290
        %v2361 = vadd.f32 %v515, %v2295
        %v2362 = vadd.f32 %v516, %v2300
        %v2363 = vadd.f32 %v517, %v2305
        %v2364 = vadd.f32 %v518, %v2310
        %v2365 = vadd.f32 %v519, %v2315
        %v2366 = vadd.f32 %v520, %v2320
        %v2367 = vadd.f32 %v521, %v2325
        %v2368 = vadd.f32 %v522, %v2330
        %v2369 = vadd.f32 %v523, %v2335
        %v2370 = vadd.f32 %v524, %v2340
        %v2371 = vadd.f32 %v525, %v2345
        %v2372 = vadd.f32 %v526, %v2350
        %v2373 = vadd.f32 %v527, %v2355
        %2374 = vst [vmem:[#allocation14] sm:$0xff] %v2358
        %2375 = vst [vmem:[#allocation14 + $0x8] sm:$0xff] %v2359
        %2376 = vst [vmem:[#allocation14 + $0x10] sm:$0xff] %v2360
        %2377 = vst [vmem:[#allocation14 + $0x18] sm:$0xff] %v2361
        %2378 = vst [vmem:[#allocation14 + $0x20] sm:$0xff] %v2362
        %2379 = vst [vmem:[#allocation14 + $0x28] sm:$0xff] %v2363
        %2380 = vst [vmem:[#allocation14 + $0x30] sm:$0xff] %v2364
        %2381 = vst [vmem:[#allocation14 + $0x38] sm:$0xff] %v2365
        %2382 = vst [vmem:[#allocation14 + $0x40] sm:$0xff] %v2366
        %2383 = vst [vmem:[#allocation14 + $0x48] sm:$0xff] %v2367
        %2384 = vst [vmem:[#allocation14 + $0x50] sm:$0xff] %v2368
        %2385 = vst [vmem:[#allocation14 + $0x58] sm:$0xff] %v2369
        %2386 = vst [vmem:[#allocation14 + $0x60] sm:$0xff] %v2370
        %2387 = vst [vmem:[#allocation14 + $0x68] sm:$0xff] %v2371
        %2388 = vst [vmem:[#allocation14 + $0x70] sm:$0xff] %v2372
        %2389 = vst [vmem:[#allocation14 + $0x78] sm:$0xff] %v2373
        // Predicated region
        $region93: #{tpu_custom_call.1} parent=59 // pred_check
          %p2390 = pneg %p268
        $region94: #{tpu_custom_call.1} parent=59 // pred_check_branch
          %2392 = sbr.rel (%p2390) target = $region96
        $region95: #{tpu_custom_call.1} parent=59 // pred_region
          %s2394 = ssub.s32 2048, 2048
          %2395 = vsyncadd [#allocation4], %s2394
          %s2396 = sshll.u32 [#allocation14], 4
          %s2397 = int_to_ptr.vmem [resolvable:$true] %s2396
          %2402 = dma.vmem_to_hbm [thread:$0]  %s2397, 2048, %s10, [#allocation4], 128, 128, 8
        $region96: #{tpu_custom_call.1} parent=59 // pred_fallthru
          _
        // Predicated region
        $region97: #{tpu_custom_call.1} parent=59 // pred_check
          %p2403 = pneg %p268
        $region98: #{tpu_custom_call.1} parent=59 // pred_check_branch
          %2405 = sbr.rel (%p2403) target = $region100
        $region99: #{tpu_custom_call.1} parent=59 // pred_region
          %2406 = dma.done [#allocation4], 2048
        $region100: #{tpu_custom_call.1} parent=59 // pred_fallthru
          _
      $region60: #{tpu_custom_call.1} parent=5 // pred_fallthru
        _
      %p2407 = scmp.le.s32.totalorder 2, %s25
      // Predicated region
      $region101: #{tpu_custom_call.1} parent=5 // pred_check
        %p2408 = pneg %p2407
      $region102: #{tpu_custom_call.1} parent=5 // pred_check_branch
        %2410 = sbr.rel (%p2408) target = $region104
      $region103: #{tpu_custom_call.1} parent=5 // pred_region
        %s2411 = ssub.s32 %s25, 2
      $region104: #{tpu_custom_call.1} parent=5 // pred_fallthru
        _
    $region6: #{tpu_custom_call.1} parent=1 // loop_footer
      %s29 = sadd.s32 1, %s25
    $region7: #{tpu_custom_call.1} parent=1 // loop_footer_branch
      %24 = sbr.rel target = $region3
    $region8: #{tpu_custom_call.1} parent=1 // loop_exit
      _
    %2412 = vsyncpa [#allocation3], 1
    %s2413 = scalar_lea.sflag [#allocation3], 1
    %2414 = vsyncpa %s2413, 1
    %2415 = vsyncpa [#allocation6], 1
    %s2416 = scalar_lea.sflag [#allocation6], 1
    %2417 = vsyncpa %s2416, 1
    %2418 = vsyncpa [#allocation9], 1
    %2419 = vsyncpa [#allocation12], 1
    %2420 = vsyncpa [#allocation4], 1
    %s2421 = scalar_lea.sflag [#allocation4], 1
    %2422 = vsyncpa %s2421, 1

</llo_original>
